<compile_context>
chip_gen: v7x
topology: tpu7x:2x2x1
jax: 0.10.0
libtpu: 0.0.40
codegen_flags: <defaults>
</compile_context>

<pallas_src>
import math

import jax
import jax.numpy as jnp
from jax import lax
from jax.experimental import pallas as pl
from jax.experimental.pallas import tpu as pltpu

MAX_PERIOD = 10000.0
_INV_SQRT2 = 1.0 / math.sqrt(2.0)
_SQRT_2_OVER_PI = math.sqrt(2.0 / math.pi)


def _make_kernel(mxu_dtype, gelu_approx):
    """Kernel body. t has already been mask-folded and scaled by max_period."""

    def kernel(t_ref, freqs_ref, w1a_ref, w1b_ref, b1_ref, w2_ref, b2_ref, o_ref):
        ang = t_ref[...] * freqs_ref[...]                        # (TM, half) f32
        s = jnp.sin(ang).astype(mxu_dtype)
        c = jnp.cos(ang).astype(mxu_dtype)
        # [sin, cos] @ w1  ==  sin @ w1[:half] + cos @ w1[half:]  (no lane concat)
        h = (
            jnp.dot(s, w1a_ref[...], preferred_element_type=jnp.float32)
            + jnp.dot(c, w1b_ref[...], preferred_element_type=jnp.float32)
            + b1_ref[...]
        )
        if gelu_approx:
            # tanh-approximate GELU; the 0.5 factor is folded into w2 (wrapper).
            h = h * (1.0 + jnp.tanh(_SQRT_2_OVER_PI * (h + 0.044715 * h * h * h)))
        else:
            # exact erf GELU, matching torch.nn.GELU() default.
            h = 0.5 * h * (1.0 + lax.erf(h * _INV_SQRT2))
        o_ref[...] = (
            jnp.dot(h.astype(mxu_dtype), w2_ref[...], preferred_element_type=jnp.float32)
            + b2_ref[...]
        ).astype(o_ref.dtype)

    return kernel


def timestep_encoder(
    timesteps,
    clean_mask,
    w1,
    b1,
    w2,
    b2,
    *,
    block_rows=None,
    mxu_dtype=jnp.bfloat16,
    out_dtype=jnp.float32,
    gelu_approx=False,
):
    """POSITIONAL TimeStepEncoder forward.

    timesteps: (G, N) float, clean_mask: (G, N) bool or None.
    w1/w2: (dim, dim) stored as (in, out) == PyTorch weight.T;  b1/b2: (dim,).
    """
    G, N = timesteps.shape
    dim = w1.shape[0]
    assert dim % 2 == 0 and dim >= 4, "dim must be even and >= 4"
    assert w1.shape == (dim, dim) and w2.shape == (dim, dim)
    half = dim // 2
    M = G * N

    out_itemsize = jnp.dtype(out_dtype).itemsize
    mxu_itemsize = jnp.dtype(mxu_dtype).itemsize

    # --- lane-dense padded feature width ------------------------------------
    dim_pad = ((dim + 127) // 128) * 128

    # --- adaptive row tile ---------------------------------------------------
    if block_rows is None:
        target_bytes = 2 * 1024 * 1024                     # ~2 MiB output tile
        tm = (target_bytes // (dim_pad * out_itemsize)) // 8 * 8
        TM = int(max(256, min(2048, tm)))
    else:
        TM = max(8, (int(block_rows) // 8) * 8)
    # Keep >= 2 grid steps when M allows so v7x's 2 TensorCores both get work.
    half_rows8 = (((M + 1) // 2 + 7) // 8) * 8
    if TM > half_rows8:
        TM = max(8, half_rows8)
    n_tiles = pl.cdiv(M, TM)
    M_pad = n_tiles * TM

    # --- wrapper-side prep (mask fold, max_period fold, padding) ------------
    t = timesteps.astype(jnp.float32)
    if clean_mask is not None:
        t = jnp.where(clean_mask, 0.0, t)                  # timesteps.masked_fill
    t = (t * MAX_PERIOD).reshape(M, 1)                     # module: time * max_period
    if M_pad != M:
        t = jnp.pad(t, ((0, M_pad - M), (0, 0)))

    # Unfolded frequency table (max_period already folded into t, matching the
    # module's evaluation order).
    freqs = jnp.exp(
        jnp.arange(half, dtype=jnp.float32) * (-(math.log(MAX_PERIOD) / (half - 1)))
    ).reshape(1, half)

    pad_c = dim_pad - dim

    def pad_cols(x):
        return jnp.pad(x, ((0, 0), (0, pad_c))) if pad_c else x

    w1a = pad_cols(w1[:half, :]).astype(mxu_dtype)         # sin half of Linear 1
    w1b = pad_cols(w1[half:, :]).astype(mxu_dtype)         # cos half of Linear 1
    w2p = 0.5 * w2 if gelu_approx else w2                  # fold GELU 0.5 (tanh path)
    if pad_c:
        w2p = jnp.pad(w2p, ((0, pad_c), (0, pad_c)))
    w2c = w2p.astype(mxu_dtype)
    b1r = pad_cols(b1.reshape(1, dim)).astype(jnp.float32)
    b2r = pad_cols(b2.reshape(1, dim)).astype(jnp.float32)

    # --- cost estimate -------------------------------------------------------
    flops = 2 * M_pad * dim_pad * (2 * half + dim_pad)
    transcend = M_pad * (2 * half + dim_pad)               # sin + cos + erf/tanh
    bytes_accessed = (
        M_pad * 4
        + M_pad * dim_pad * out_itemsize
        + (2 * half * dim_pad + dim_pad * dim_pad) * mxu_itemsize
        + (half + 2 * dim_pad) * 4
    )
    cost = pl.CostEstimate(
        flops=int(flops), transcendentals=int(transcend), bytes_accessed=int(bytes_accessed)
    )

    weight_bytes = (2 * half * dim_pad + dim_pad * dim_pad) * mxu_itemsize + (
        half + 2 * dim_pad
    ) * 4

    def _vmem_limit(single_buffer):
        wbuf = 1 if single_buffer else 2
        io_bytes = 2 * TM * 4 + 2 * TM * dim_pad * out_itemsize   # double-buffered I/O
        interm = 6 * TM * dim_pad * 4                             # f32 intermediates
        need = wbuf * weight_bytes + io_bytes + interm + (2 << 20)
        try:
            phys = int(pltpu.get_tpu_info().vmem_capacity_bytes)
        except Exception:
            phys = 64 * 1024 * 1024                               # v7x-safe fallback
        return int(min(max(need, 16 * 1024 * 1024), int(phys * 0.8)))

    row_spec = pl.BlockSpec((TM, 1), lambda i: (i, 0))
    out_spec = pl.BlockSpec((TM, dim_pad), lambda i: (i, 0))

    def run(single_buffer):
        ckw = {}
        if single_buffer and hasattr(pl, "Buffered"):
            # Constant blocks: no need for double buffering -> halve weight VMEM.
            ckw["pipeline_mode"] = pl.Buffered(1)
        const = lambda shape: pl.BlockSpec(shape, lambda i: (0, 0), **ckw)
        in_specs = [
            row_spec,
            const((1, half)),
            const((half, dim_pad)),
            const((half, dim_pad)),
            const((1, dim_pad)),
            const((dim_pad, dim_pad)),
            const((1, dim_pad)),
        ]
        return pl.pallas_call(
            _make_kernel(mxu_dtype, gelu_approx),
            out_shape=jax.ShapeDtypeStruct((M_pad, dim_pad), out_dtype),
            grid_spec=pltpu.PrefetchScalarGridSpec(
                num_scalar_prefetch=0,
                grid=(n_tiles,),
                in_specs=in_specs,
                out_specs=out_spec,
            ),
            compiler_params=pltpu.CompilerParams(
                dimension_semantics=("parallel",),        # shard M over v7x's 2 TCs
                vmem_limit_bytes=_vmem_limit(single_buffer),
            ),
            cost_estimate=cost,
        )(t, freqs, w1a, w1b, b1r, w2c, b2r)

    try:
        out = run(True)
    except Exception:
        out = run(False)   # fall back to default (double-buffered) constant specs

    return out[:M, :dim].reshape(G, N, dim)


# ----------------------------- pure-JAX reference -----------------------------
def _reference(timesteps, clean_mask, w1, b1, w2, b2):
    dim = w1.shape[0]
    half = dim // 2
    t = timesteps.astype(jnp.float32)
    if clean_mask is not None:
        t = jnp.where(clean_mask, 0.0, t)
    t = t[..., None] * MAX_PERIOD                                     # (G, N, 1)
    freqs = jnp.exp(
        jnp.arange(half, dtype=jnp.float32) * -(math.log(MAX_PERIOD) / (half - 1))
    )
    ang = t * freqs                                                   # (G, N, half)
    emb = jnp.concatenate([jnp.sin(ang), jnp.cos(ang)], axis=-1)      # (G, N, dim)
    hp = lax.Precision.HIGHEST
    h = jnp.dot(emb, w1, precision=hp) + b1
    h = jax.nn.gelu(h, approximate=False)
    return jnp.dot(h, w2, precision=hp) + b2


if __name__ == "__main__":
    ngraph, nnodes, dim = 2, 8, 32

    key = jax.random.PRNGKey(0)
    k_t, k_m, k_w1, k_b1, k_w2, k_b2 = jax.random.split(key, 6)

    timesteps = jax.random.uniform(k_t, (ngraph, nnodes), dtype=jnp.float32)
    clean_mask = jax.random.bernoulli(k_m, 0.3, (ngraph, nnodes))

    # Deterministic Linear params, stored as (in, out) == PyTorch weight.T
    bound = 1.0 / math.sqrt(dim)
    w1 = jax.random.uniform(k_w1, (dim, dim), jnp.float32, -bound, bound)
    b1 = jax.random.uniform(k_b1, (dim,), jnp.float32, -bound, bound)
    w2 = jax.random.uniform(k_w2, (dim, dim), jnp.float32, -bound, bound)
    b2 = jax.random.uniform(k_b2, (dim,), jnp.float32, -bound, bound)

    ref = _reference(timesteps, clean_mask, w1, b1, w2, b2)

    # 1) default path: bf16 MXU, f32 output, exact erf GELU, masked
    out = jax.block_until_ready(timestep_encoder(timesteps, clean_mask, w1, b1, w2, b2))
    assert out.shape == (ngraph, nnodes, dim)
    assert jnp.allclose(out, ref, atol=6e-2, rtol=6e-2)

    # 2) f32-MXU path (tight check of structure: padding, mask fold, split matmul)
    out_f32 = jax.block_until_ready(
        timestep_encoder(timesteps, clean_mask, w1, b1, w2, b2, mxu_dtype=jnp.float32)
    )
    assert jnp.allclose(out_f32, ref, atol=2e-2, rtol=2e-2)

    # 3) mask-free, ragged M (exercises row padding + multi-tile grid), bf16 output
    t2 = jax.random.uniform(k_t, (3, 5), dtype=jnp.float32)
    out2 = jax.block_until_ready(
        timestep_encoder(t2, None, w1, b1, w2, b2, out_dtype=jnp.bfloat16)
    )
    ref2 = _reference(t2, None, w1, b1, w2, b2)
    assert out2.shape == (3, 5, dim)
    assert jnp.allclose(out2.astype(jnp.float32), ref2, atol=6e-2, rtol=6e-2)

    # 4) tanh-approximate GELU path (flagged; not bit-exact vs torch default GELU)
    out_tanh = jax.block_until_ready(
        timestep_encoder(timesteps, clean_mask, w1, b1, w2, b2, gelu_approx=True)
    )
    assert jnp.allclose(out_tanh, ref, atol=6e-2, rtol=6e-2)

    print("KERNEL_OK")
</pallas_src>

<mosaic_0001>
module attributes {stable_mosaic.version = 11 : i64} {
  func.func @kernel(%arg0: i32, %arg1: memref<8x1xf32, #tpu.memory_space<vmem>>, %arg2: memref<1x16xf32, #tpu.memory_space<vmem>>, %arg3: memref<16x128xbf16, #tpu.memory_space<vmem>>, %arg4: memref<16x128xbf16, #tpu.memory_space<vmem>>, %arg5: memref<1x128xf32, #tpu.memory_space<vmem>>, %arg6: memref<128x128xbf16, #tpu.memory_space<vmem>>, %arg7: memref<1x128xf32, #tpu.memory_space<vmem>>, %arg8: memref<8x128xf32, #tpu.memory_space<vmem>>) attributes {dimension_semantics = [#tpu.dimension_semantics<parallel>], iteration_bounds = array<i64: 2>, scalar_prefetch = 0 : i64, scratch_operands = 0 : i64, tpu.core_type = #tpu.core_type<tc>, window_params = [{transform_indices = @transform_0, window_bounds = array<i64: 8, 1>}, {pipeline_mode = #tpu.pipeline_mode<synchronous>, transform_indices = @transform_1, window_bounds = array<i64: 1, 16>}, {pipeline_mode = #tpu.pipeline_mode<synchronous>, transform_indices = @transform_2, window_bounds = array<i64: 16, 128>}, {pipeline_mode = #tpu.pipeline_mode<synchronous>, transform_indices = @transform_3, window_bounds = array<i64: 16, 128>}, {pipeline_mode = #tpu.pipeline_mode<synchronous>, transform_indices = @transform_4, window_bounds = array<i64: 1, 128>}, {pipeline_mode = #tpu.pipeline_mode<synchronous>, transform_indices = @transform_5, window_bounds = array<i64: 128, 128>}, {pipeline_mode = #tpu.pipeline_mode<synchronous>, transform_indices = @transform_6, window_bounds = array<i64: 1, 128>}, {transform_indices = @transform_7, window_bounds = array<i64: 8, 128>}]} {
    %c0 = arith.constant 0 : index
    %c0_0 = arith.constant 0 : index
    %0 = vector.load %arg1[%c0, %c0_0] : memref<8x1xf32, #tpu.memory_space<vmem>>, vector<8x1xf32>
    %c0_1 = arith.constant 0 : index
    %c0_2 = arith.constant 0 : index
    %1 = vector.load %arg2[%c0_1, %c0_2] : memref<1x16xf32, #tpu.memory_space<vmem>>, vector<1x16xf32>
    %2 = vector.broadcast %0 : vector<8x1xf32> to vector<8x16xf32>
    %3 = vector.broadcast %1 : vector<1x16xf32> to vector<8x16xf32>
    %4 = arith.mulf %2, %3 : vector<8x16xf32>
    %5 = math.sin %4 : vector<8x16xf32>
    %6 = arith.truncf %5 : vector<8x16xf32> to vector<8x16xbf16>
    %7 = math.cos %4 : vector<8x16xf32>
    %8 = arith.truncf %7 : vector<8x16xf32> to vector<8x16xbf16>
    %c0_3 = arith.constant 0 : index
    %c0_4 = arith.constant 0 : index
    %9 = vector.load %arg3[%c0_3, %c0_4] : memref<16x128xbf16, #tpu.memory_space<vmem>>, vector<16x128xbf16>
    %cst = arith.constant dense<0.000000e+00> : vector<8x128xf32>
    %10 = tpu.matmul %6, %9, %cst {dimension_numbers = #tpu.dot_dimension_numbers<[1], [0], [0], [1], [0, 0, 1, 1], [], []>} : vector<8x16xbf16>, vector<16x128xbf16>, vector<8x128xf32> -> vector<8x128xf32>
    %c0_5 = arith.constant 0 : index
    %c0_6 = arith.constant 0 : index
    %11 = vector.load %arg4[%c0_5, %c0_6] : memref<16x128xbf16, #tpu.memory_space<vmem>>, vector<16x128xbf16>
    %cst_7 = arith.constant dense<0.000000e+00> : vector<8x128xf32>
    %12 = tpu.matmul %8, %11, %cst_7 {dimension_numbers = #tpu.dot_dimension_numbers<[1], [0], [0], [1], [0, 0, 1, 1], [], []>} : vector<8x16xbf16>, vector<16x128xbf16>, vector<8x128xf32> -> vector<8x128xf32>
    %13 = arith.addf %10, %12 : vector<8x128xf32>
    %c0_8 = arith.constant 0 : index
    %c0_9 = arith.constant 0 : index
    %14 = vector.load %arg5[%c0_8, %c0_9] : memref<1x128xf32, #tpu.memory_space<vmem>>, vector<1x128xf32>
    %15 = vector.broadcast %14 : vector<1x128xf32> to vector<8x128xf32>
    %16 = arith.addf %13, %15 : vector<8x128xf32>
    %cst_10 = arith.constant 5.000000e-01 : f32
    %17 = vector.broadcast %cst_10 : f32 to vector<8x128xf32>
    %18 = arith.mulf %17, %16 : vector<8x128xf32>
    %cst_11 = arith.constant 0.707106769 : f32
    %19 = vector.broadcast %cst_11 : f32 to vector<8x128xf32>
    %20 = arith.mulf %16, %19 : vector<8x128xf32>
    %21 = math.erf %20 : vector<8x128xf32>
    %cst_12 = arith.constant 1.000000e+00 : f32
    %22 = vector.broadcast %cst_12 : f32 to vector<8x128xf32>
    %23 = arith.addf %22, %21 : vector<8x128xf32>
    %24 = arith.mulf %18, %23 : vector<8x128xf32>
    %25 = arith.truncf %24 : vector<8x128xf32> to vector<8x128xbf16>
    %c0_13 = arith.constant 0 : index
    %c0_14 = arith.constant 0 : index
    %26 = vector.load %arg6[%c0_13, %c0_14] : memref<128x128xbf16, #tpu.memory_space<vmem>>, vector<128x128xbf16>
    %cst_15 = arith.constant dense<0.000000e+00> : vector<8x128xf32>
    %27 = tpu.matmul %25, %26, %cst_15 {dimension_numbers = #tpu.dot_dimension_numbers<[1], [0], [0], [1], [0, 0, 1, 1], [], []>} : vector<8x128xbf16>, vector<128x128xbf16>, vector<8x128xf32> -> vector<8x128xf32>
    %c0_16 = arith.constant 0 : index
    %c0_17 = arith.constant 0 : index
    %28 = vector.load %arg7[%c0_16, %c0_17] : memref<1x128xf32, #tpu.memory_space<vmem>>, vector<1x128xf32>
    %29 = vector.broadcast %28 : vector<1x128xf32> to vector<8x128xf32>
    %30 = arith.addf %27, %29 : vector<8x128xf32>
    %c0_18 = arith.constant 0 : index
    %c0_19 = arith.constant 0 : index
    %31 = vector.load %arg8[%c0_18, %c0_19] : memref<8x128xf32, #tpu.memory_space<vmem>>, vector<8x128xf32>
    tpu.vector_store %arg8[%c0_18, %c0_19], %30 {strides = array<i32>} : memref<8x128xf32, #tpu.memory_space<vmem>>, vector<8x128xf32>,
    return
  }
  func.func @transform_0(%arg0: i32) -> (i32, i32) {
    %c0_i32 = arith.constant 0 : i32
    %c0_i32_0 = arith.constant 0 : i32
    return %arg0, %c0_i32 : i32, i32
  }
  func.func @transform_1(%arg0: i32) -> (i32, i32) {
    %c0_i32 = arith.constant 0 : i32
    %c0_i32_0 = arith.constant 0 : i32
    %c0_i32_1 = arith.constant 0 : i32
    return %c0_i32, %c0_i32_0 : i32, i32
  }
  func.func @transform_2(%arg0: i32) -> (i32, i32) {
    %c0_i32 = arith.constant 0 : i32
    %c0_i32_0 = arith.constant 0 : i32
    %c0_i32_1 = arith.constant 0 : i32
    return %c0_i32, %c0_i32_0 : i32, i32
  }
  func.func @transform_3(%arg0: i32) -> (i32, i32) {
    %c0_i32 = arith.constant 0 : i32
    %c0_i32_0 = arith.constant 0 : i32
    %c0_i32_1 = arith.constant 0 : i32
    return %c0_i32, %c0_i32_0 : i32, i32
  }
  func.func @transform_4(%arg0: i32) -> (i32, i32) {
    %c0_i32 = arith.constant 0 : i32
    %c0_i32_0 = arith.constant 0 : i32
    %c0_i32_1 = arith.constant 0 : i32
    return %c0_i32, %c0_i32_0 : i32, i32
  }
  func.func @transform_5(%arg0: i32) -> (i32, i32) {
    %c0_i32 = arith.constant 0 : i32
    %c0_i32_0 = arith.constant 0 : i32
    %c0_i32_1 = arith.constant 0 : i32
    return %c0_i32, %c0_i32_0 : i32, i32
  }
  func.func @transform_6(%arg0: i32) -> (i32, i32) {
    %c0_i32 = arith.constant 0 : i32
    %c0_i32_0 = arith.constant 0 : i32
    %c0_i32_1 = arith.constant 0 : i32
    return %c0_i32, %c0_i32_0 : i32, i32
  }
  func.func @transform_7(%arg0: i32) -> (i32, i32) {
    %c0_i32 = arith.constant 0 : i32
    %c0_i32_0 = arith.constant 0 : i32
    return %arg0, %c0_i32 : i32, i32
  }
}

module attributes {stable_mosaic.version = 11 : i64} {
  func.func @kernel(%arg0: i32, %arg1: memref<8x1xf32, #tpu.memory_space<vmem>>, %arg2: memref<1x16xf32, #tpu.memory_space<vmem>>, %arg3: memref<16x128xbf16, #tpu.memory_space<vmem>>, %arg4: memref<16x128xbf16, #tpu.memory_space<vmem>>, %arg5: memref<1x128xf32, #tpu.memory_space<vmem>>, %arg6: memref<128x128xbf16, #tpu.memory_space<vmem>>, %arg7: memref<1x128xf32, #tpu.memory_space<vmem>>, %arg8: memref<8x128xf32, #tpu.memory_space<vmem>>) attributes {dimension_semantics = [#tpu.dimension_semantics<parallel>], iteration_bounds = array<i64: 2>, scalar_prefetch = 0 : i64, scratch_operands = 0 : i64, tpu.core_type = #tpu.core_type<tc>, window_params = [{transform_indices = @transform_0, window_bounds = array<i64: 8, 1>}, {pipeline_mode = #tpu.pipeline_mode<synchronous>, transform_indices = @transform_1, window_bounds = array<i64: 1, 16>}, {pipeline_mode = #tpu.pipeline_mode<synchronous>, transform_indices = @transform_2, window_bounds = array<i64: 16, 128>}, {pipeline_mode = #tpu.pipeline_mode<synchronous>, transform_indices = @transform_3, window_bounds = array<i64: 16, 128>}, {pipeline_mode = #tpu.pipeline_mode<synchronous>, transform_indices = @transform_4, window_bounds = array<i64: 1, 128>}, {pipeline_mode = #tpu.pipeline_mode<synchronous>, transform_indices = @transform_5, window_bounds = array<i64: 128, 128>}, {pipeline_mode = #tpu.pipeline_mode<synchronous>, transform_indices = @transform_6, window_bounds = array<i64: 1, 128>}, {transform_indices = @transform_7, window_bounds = array<i64: 8, 128>}]} {
    %c0 = arith.constant 0 : index
    %c0_0 = arith.constant 0 : index
    %0 = vector.load %arg1[%c0, %c0_0] : memref<8x1xf32, #tpu.memory_space<vmem>>, vector<8x1xf32>
    %c0_1 = arith.constant 0 : index
    %c0_2 = arith.constant 0 : index
    %1 = vector.load %arg2[%c0_1, %c0_2] : memref<1x16xf32, #tpu.memory_space<vmem>>, vector<1x16xf32>
    %2 = vector.broadcast %0 : vector<8x1xf32> to vector<8x16xf32>
    %3 = vector.broadcast %1 : vector<1x16xf32> to vector<8x16xf32>
    %4 = arith.mulf %2, %3 : vector<8x16xf32>
    %5 = math.sin %4 : vector<8x16xf32>
    %6 = arith.truncf %5 : vector<8x16xf32> to vector<8x16xbf16>
    %7 = math.cos %4 : vector<8x16xf32>
    %8 = arith.truncf %7 : vector<8x16xf32> to vector<8x16xbf16>
    %c0_3 = arith.constant 0 : index
    %c0_4 = arith.constant 0 : index
    %9 = vector.load %arg3[%c0_3, %c0_4] : memref<16x128xbf16, #tpu.memory_space<vmem>>, vector<16x128xbf16>
    %cst = arith.constant dense<0.000000e+00> : vector<8x128xf32>
    %10 = tpu.matmul %6, %9, %cst {dimension_numbers = #tpu.dot_dimension_numbers<[1], [0], [0], [1], [0, 0, 1, 1], [], []>} : vector<8x16xbf16>, vector<16x128xbf16>, vector<8x128xf32> -> vector<8x128xf32>
    %c0_5 = arith.constant 0 : index
    %c0_6 = arith.constant 0 : index
    %11 = vector.load %arg4[%c0_5, %c0_6] : memref<16x128xbf16, #tpu.memory_space<vmem>>, vector<16x128xbf16>
    %cst_7 = arith.constant dense<0.000000e+00> : vector<8x128xf32>
    %12 = tpu.matmul %8, %11, %cst_7 {dimension_numbers = #tpu.dot_dimension_numbers<[1], [0], [0], [1], [0, 0, 1, 1], [], []>} : vector<8x16xbf16>, vector<16x128xbf16>, vector<8x128xf32> -> vector<8x128xf32>
    %13 = arith.addf %10, %12 : vector<8x128xf32>
    %c0_8 = arith.constant 0 : index
    %c0_9 = arith.constant 0 : index
    %14 = vector.load %arg5[%c0_8, %c0_9] : memref<1x128xf32, #tpu.memory_space<vmem>>, vector<1x128xf32>
    %15 = vector.broadcast %14 : vector<1x128xf32> to vector<8x128xf32>
    %16 = arith.addf %13, %15 : vector<8x128xf32>
    %cst_10 = arith.constant 5.000000e-01 : f32
    %17 = vector.broadcast %cst_10 : f32 to vector<8x128xf32>
    %18 = arith.mulf %17, %16 : vector<8x128xf32>
    %cst_11 = arith.constant 0.707106769 : f32
    %19 = vector.broadcast %cst_11 : f32 to vector<8x128xf32>
    %20 = arith.mulf %16, %19 : vector<8x128xf32>
    %21 = math.erf %20 : vector<8x128xf32>
    %cst_12 = arith.constant 1.000000e+00 : f32
    %22 = vector.broadcast %cst_12 : f32 to vector<8x128xf32>
    %23 = arith.addf %22, %21 : vector<8x128xf32>
    %24 = arith.mulf %18, %23 : vector<8x128xf32>
    %25 = arith.truncf %24 : vector<8x128xf32> to vector<8x128xbf16>
    %c0_13 = arith.constant 0 : index
    %c0_14 = arith.constant 0 : index
    %26 = vector.load %arg6[%c0_13, %c0_14] : memref<128x128xbf16, #tpu.memory_space<vmem>>, vector<128x128xbf16>
    %cst_15 = arith.constant dense<0.000000e+00> : vector<8x128xf32>
    %27 = tpu.matmul %25, %26, %cst_15 {dimension_numbers = #tpu.dot_dimension_numbers<[1], [0], [0], [1], [0, 0, 1, 1], [], []>} : vector<8x128xbf16>, vector<128x128xbf16>, vector<8x128xf32> -> vector<8x128xf32>
    %c0_16 = arith.constant 0 : index
    %c0_17 = arith.constant 0 : index
    %28 = vector.load %arg7[%c0_16, %c0_17] : memref<1x128xf32, #tpu.memory_space<vmem>>, vector<1x128xf32>
    %29 = vector.broadcast %28 : vector<1x128xf32> to vector<8x128xf32>
    %30 = arith.addf %27, %29 : vector<8x128xf32>
    %c0_18 = arith.constant 0 : index
    %c0_19 = arith.constant 0 : index
    %31 = vector.load %arg8[%c0_18, %c0_19] : memref<8x128xf32, #tpu.memory_space<vmem>>, vector<8x128xf32>
    tpu.vector_store %arg8[%c0_18, %c0_19], %30 {strides = array<i32>} : memref<8x128xf32, #tpu.memory_space<vmem>>, vector<8x128xf32>,
    return
  }
  func.func @transform_0(%arg0: i32) -> (i32, i32) {
    %c0_i32 = arith.constant 0 : i32
    %c0_i32_0 = arith.constant 0 : i32
    return %arg0, %c0_i32 : i32, i32
  }
  func.func @transform_1(%arg0: i32) -> (i32, i32) {
    %c0_i32 = arith.constant 0 : i32
    %c0_i32_0 = arith.constant 0 : i32
    %c0_i32_1 = arith.constant 0 : i32
    return %c0_i32, %c0_i32_0 : i32, i32
  }
  func.func @transform_2(%arg0: i32) -> (i32, i32) {
    %c0_i32 = arith.constant 0 : i32
    %c0_i32_0 = arith.constant 0 : i32
    %c0_i32_1 = arith.constant 0 : i32
    return %c0_i32, %c0_i32_0 : i32, i32
  }
  func.func @transform_3(%arg0: i32) -> (i32, i32) {
    %c0_i32 = arith.constant 0 : i32
    %c0_i32_0 = arith.constant 0 : i32
    %c0_i32_1 = arith.constant 0 : i32
    return %c0_i32, %c0_i32_0 : i32, i32
  }
  func.func @transform_4(%arg0: i32) -> (i32, i32) {
    %c0_i32 = arith.constant 0 : i32
    %c0_i32_0 = arith.constant 0 : i32
    %c0_i32_1 = arith.constant 0 : i32
    return %c0_i32, %c0_i32_0 : i32, i32
  }
  func.func @transform_5(%arg0: i32) -> (i32, i32) {
    %c0_i32 = arith.constant 0 : i32
    %c0_i32_0 = arith.constant 0 : i32
    %c0_i32_1 = arith.constant 0 : i32
    return %c0_i32, %c0_i32_0 : i32, i32
  }
  func.func @transform_6(%arg0: i32) -> (i32, i32) {
    %c0_i32 = arith.constant 0 : i32
    %c0_i32_0 = arith.constant 0 : i32
    %c0_i32_1 = arith.constant 0 : i32
    return %c0_i32, %c0_i32_0 : i32, i32
  }
  func.func @transform_7(%arg0: i32) -> (i32, i32) {
    %c0_i32 = arith.constant 0 : i32
    %c0_i32_0 = arith.constant 0 : i32
    return %arg0, %c0_i32 : i32, i32
  }
}

</mosaic_0001>

<llo_original>
// kernel: tpu_custom_call.1
$region0: #{tpu_custom_call.1}
  #allocation0 [shape = 'u32[]', space=smem, size = 0x4, offset = 0x4, fixed_abs, tag = 'smem constant byte address 0x4 - core index']
  #allocation1 [shape = 'u32[144,128]{1,0:T(1,128)}', space=vmem, size = 0x12000, scoped, tag = 'internal scratch']
  %s0 = inlined_call_operand.vmem [shape: f32[16,1], index: 0, kind: input, shape index: {}]
  %s1 = inlined_call_operand.vmem [shape: f32[1,16], index: 1, kind: input, shape index: {}]
  %s2 = inlined_call_operand.vmem [shape: bf16[16,128], index: 2, kind: input, shape index: {}]
  %s3 = inlined_call_operand.vmem [shape: bf16[16,128], index: 3, kind: input, shape index: {}]
  %s4 = inlined_call_operand.vmem [shape: f32[1,128], index: 4, kind: input, shape index: {}]
  %s5 = inlined_call_operand.hbm [shape: bf16[128,128], index: 5, kind: input, shape index: {}]
  %s6 = inlined_call_operand.vmem [shape: f32[1,128], index: 6, kind: input, shape index: {}]
  %s7 = inlined_call_operand.hbm [shape: f32[16,128], index: 7, kind: output, shape index: {}]
  %s8 = sld [smem:[#allocation0]]
  $region65: #{tpu_custom_call.1} parent=0
    _
  %s10 = ssub.s32 1, %s8
  %s11 = scalar_select 0, %s10, %s8
  $region1: #{tpu_custom_call.1} parent=0
    #allocation2 [shape = 'u8[32768]{0}', space=vmem, size = 0x8000, scoped, tag = 'input window, operand 5, single buffered']
    #allocation3 [shape = 's32[2]{0}', space=sflag, size = 0x8, scoped, tag = 'scoped memory for tpu_custom_call.1']
    #allocation4 [shape = 's32[2]{0}', space=sflag, size = 0x8, scoped, tag = 'scoped memory for tpu_custom_call.1']
    #allocation5 [shape = 'u8[8192]{0}', space=vmem, size = 0x2000, scoped, tag = 'output window, operand 0']
    %12 = vsyncpa [#allocation3], 0
    %13 = vsyncpa [#allocation4], 0
    %s14 = scalar_lea.sflag [#allocation4], 1
    %15 = vsyncpa %s14, 0
    loop: start=0, step=1, limit=4
    $region2: #{tpu_custom_call.1} parent=1 // loop_pre_header
      _
    $region3: #{tpu_custom_call.1} parent=1 // loop_header
      %s17 = sphi 0, %s21
      %p18 = scmp.ge.s32.totalorder %s17, 4
      %s27 = sphi 0, %s29
      %s30 = sphi 0, %s27
      %s31 = sphi 0, %s30
      %s47 = sphi 0, %s31
      %s51 = sphi 0, %s51
      %s53 = sphi 0, %s51
      %s54 = sphi 0, %s53
      %s68 = sphi 0, %s54
      %s72 = sphi 0, %s72
      %s74 = sphi 0, %s72
      %s75 = sphi 0, %s74
      %s89 = sphi 0, %s75
      %s93 = sphi 0, %s93
      %s95 = sphi 0, %s93
      %s96 = sphi 0, %s95
      %s110 = sphi 0, %s96
      %s114 = sphi 0, %s114
      %s116 = sphi 0, %s114
      %s117 = sphi 0, %s116
      %s131 = sphi 0, %s117
      %s135 = sphi 0, %s135
      %s137 = sphi 0, %s135
      %s138 = sphi 0, %s137
      %s152 = sphi 0, %s138
      %s156 = sphi 0, %s156
      %s158 = sphi 0, %s156
      %s159 = sphi 0, %s158
      %s173 = sphi 0, %s159
      %s179 = sphi 0, %s181
      %s182 = sphi 0, %s179
      %s183 = sphi 0, %s182
      %s199 = sphi 0, %s183
    $region4: #{tpu_custom_call.1} parent=1 // loop_header_branch
      %20 = sbr.rel (%p18) target = $region8
    $region5: #{tpu_custom_call.1} parent=1 // loop_body
      %s22 = ssub.s32 %s17, 1
      %s23 = ssub.s32 %s17, 2
      %s24 = sadd.s32 %s17, 1
      %s25 = ssub.s32 %s17, %s24
      %p26 = scmp.eq.s32.totalorder %s25, 0
      %s28 = sadd.s32 %s27, 1
      %s29 = scalar_select %p26, %s27, %s28
      %p32 = pneg %p26
      %p33 = scmp.eq.s32.totalorder %s17, 1
      %p34 = por %p32, %p33
      %p35 = scmp.ne.s32.totalorder %s27, %s30
      %p36 = scmp.eq.s32.totalorder %s17, 0
      %p37 = por %p35, %p36
      %p38 = scmp.ne.s32.totalorder %s27, %s30
      %p39 = scmp.eq.s32.totalorder %s22, 1
      %p40 = por %p38, %p39
      %p41 = scmp.ne.s32.totalorder %s30, %s31
      %p42 = scmp.eq.s32.totalorder %s22, 0
      %p43 = por %p41, %p42
      %p44 = scmp.ne.s32.totalorder %s30, %s31
      %p45 = scmp.eq.s32.totalorder %s23, 1
      %p46 = por %p44, %p45
      %p48 = scmp.ne.s32.totalorder %s31, %s47
      %p49 = scmp.eq.s32.totalorder %s23, 0
      %p50 = por %p48, %p49
      %s52 = sadd.s32 %s51, 1
      %p55 = scmp.eq.s32.totalorder %s17, 1
      %p56 = scmp.ne.s32.totalorder %s51, %s53
      %p57 = scmp.eq.s32.totalorder %s17, 0
      %p58 = por %p56, %p57
      %p59 = scmp.ne.s32.totalorder %s51, %s53
      %p60 = scmp.eq.s32.totalorder %s22, 1
      %p61 = por %p59, %p60
      %p62 = scmp.ne.s32.totalorder %s53, %s54
      %p63 = scmp.eq.s32.totalorder %s22, 0
      %p64 = por %p62, %p63
      %p65 = scmp.ne.s32.totalorder %s53, %s54
      %p66 = scmp.eq.s32.totalorder %s23, 1
      %p67 = por %p65, %p66
      %p69 = scmp.ne.s32.totalorder %s54, %s68
      %p70 = scmp.eq.s32.totalorder %s23, 0
      %p71 = por %p69, %p70
      %s73 = sadd.s32 %s72, 1
      %p76 = scmp.eq.s32.totalorder %s17, 1
      %p77 = scmp.ne.s32.totalorder %s72, %s74
      %p78 = scmp.eq.s32.totalorder %s17, 0
      %p79 = por %p77, %p78
      %p80 = scmp.ne.s32.totalorder %s72, %s74
      %p81 = scmp.eq.s32.totalorder %s22, 1
      %p82 = por %p80, %p81
      %p83 = scmp.ne.s32.totalorder %s74, %s75
      %p84 = scmp.eq.s32.totalorder %s22, 0
      %p85 = por %p83, %p84
      %p86 = scmp.ne.s32.totalorder %s74, %s75
      %p87 = scmp.eq.s32.totalorder %s23, 1
      %p88 = por %p86, %p87
      %p90 = scmp.ne.s32.totalorder %s75, %s89
      %p91 = scmp.eq.s32.totalorder %s23, 0
      %p92 = por %p90, %p91
      %s94 = sadd.s32 %s93, 1
      %p97 = scmp.eq.s32.totalorder %s17, 1
      %p98 = scmp.ne.s32.totalorder %s93, %s95
      %p99 = scmp.eq.s32.totalorder %s17, 0
      %p100 = por %p98, %p99
      %p101 = scmp.ne.s32.totalorder %s93, %s95
      %p102 = scmp.eq.s32.totalorder %s22, 1
      %p103 = por %p101, %p102
      %p104 = scmp.ne.s32.totalorder %s95, %s96
      %p105 = scmp.eq.s32.totalorder %s22, 0
      %p106 = por %p104, %p105
      %p107 = scmp.ne.s32.totalorder %s95, %s96
      %p108 = scmp.eq.s32.totalorder %s23, 1
      %p109 = por %p107, %p108
      %p111 = scmp.ne.s32.totalorder %s96, %s110
      %p112 = scmp.eq.s32.totalorder %s23, 0
      %p113 = por %p111, %p112
      %s115 = sadd.s32 %s114, 1
      %p118 = scmp.eq.s32.totalorder %s17, 1
      %p119 = scmp.ne.s32.totalorder %s114, %s116
      %p120 = scmp.eq.s32.totalorder %s17, 0
      %p121 = por %p119, %p120
      %p122 = scmp.ne.s32.totalorder %s114, %s116
      %p123 = scmp.eq.s32.totalorder %s22, 1
      %p124 = por %p122, %p123
      %p125 = scmp.ne.s32.totalorder %s116, %s117
      %p126 = scmp.eq.s32.totalorder %s22, 0
      %p127 = por %p125, %p126
      %p128 = scmp.ne.s32.totalorder %s116, %s117
      %p129 = scmp.eq.s32.totalorder %s23, 1
      %p130 = por %p128, %p129
      %p132 = scmp.ne.s32.totalorder %s117, %s131
      %p133 = scmp.eq.s32.totalorder %s23, 0
      %p134 = por %p132, %p133
      %s136 = sadd.s32 %s135, 1
      %p139 = scmp.eq.s32.totalorder %s17, 1
      %p140 = scmp.ne.s32.totalorder %s135, %s137
      %p141 = scmp.eq.s32.totalorder %s17, 0
      %p142 = por %p140, %p141
      %p143 = scmp.ne.s32.totalorder %s135, %s137
      %p144 = scmp.eq.s32.totalorder %s22, 1
      %p145 = por %p143, %p144
      %p146 = scmp.ne.s32.totalorder %s137, %s138
      %p147 = scmp.eq.s32.totalorder %s22, 0
      %p148 = por %p146, %p147
      %p149 = scmp.ne.s32.totalorder %s137, %s138
      %p150 = scmp.eq.s32.totalorder %s23, 1
      %p151 = por %p149, %p150
      %p153 = scmp.ne.s32.totalorder %s138, %s152
      %p154 = scmp.eq.s32.totalorder %s23, 0
      %p155 = por %p153, %p154
      %s157 = sadd.s32 %s156, 1
      %p160 = scmp.eq.s32.totalorder %s17, 1
      %p161 = scmp.ne.s32.totalorder %s156, %s158
      %p162 = scmp.eq.s32.totalorder %s17, 0
      %p163 = por %p161, %p162
      %p164 = scmp.ne.s32.totalorder %s156, %s158
      %p165 = scmp.eq.s32.totalorder %s22, 1
      %p166 = por %p164, %p165
      %p167 = scmp.ne.s32.totalorder %s158, %s159
      %p168 = scmp.eq.s32.totalorder %s22, 0
      %p169 = por %p167, %p168
      %p170 = scmp.ne.s32.totalorder %s158, %s159
      %p171 = scmp.eq.s32.totalorder %s23, 1
      %p172 = por %p170, %p171
      %p174 = scmp.ne.s32.totalorder %s159, %s173
      %p175 = scmp.eq.s32.totalorder %s23, 0
      %p176 = por %p174, %p175
      %s177 = ssub.s32 %s17, %s24
      %p178 = scmp.eq.s32.totalorder %s177, 0
      %s180 = sadd.s32 %s179, 1
      %s181 = scalar_select %p178, %s179, %s180
      %p184 = pneg %p178
      %p185 = scmp.eq.s32.totalorder %s17, 1
      %p186 = por %p184, %p185
      %p187 = scmp.ne.s32.totalorder %s179, %s182
      %p188 = scmp.eq.s32.totalorder %s17, 0
      %p189 = por %p187, %p188
      %p190 = scmp.ne.s32.totalorder %s179, %s182
      %p191 = scmp.eq.s32.totalorder %s22, 1
      %p192 = por %p190, %p191
      %p193 = scmp.ne.s32.totalorder %s182, %s183
      %p194 = scmp.eq.s32.totalorder %s22, 0
      %p195 = por %p193, %p194
      %p196 = scmp.ne.s32.totalorder %s182, %s183
      %p197 = scmp.eq.s32.totalorder %s23, 1
      %p198 = por %p196, %p197
      %p200 = scmp.ne.s32.totalorder %s183, %s199
      %p201 = scmp.eq.s32.totalorder %s23, 0
      %p202 = por %p200, %p201
      %p203 = scmp.le.s32.totalorder 1, %s17
      %p204 = scmp.lt.s32.totalorder %s17, 3
      %p205 = pnand %p203, %p204
      %p206 = pneg %p205
      // Predicated region
      $region9: #{tpu_custom_call.1} parent=5 // pred_check
        _
      $region10: #{tpu_custom_call.1} parent=5 // pred_check_branch
        %208 = sbr.rel (%p205) target = $region12
      $region11: #{tpu_custom_call.1} parent=5 // pred_region
        %s209 = ssub.s32 %s17, 1
        // Predicated region
        $region13: #{tpu_custom_call.1} parent=11 // pred_check
          %p210 = pneg %p64
        $region14: #{tpu_custom_call.1} parent=11 // pred_check_branch
          %212 = sbr.rel (%p210) target = $region16
        $region15: #{tpu_custom_call.1} parent=11 // pred_region
          _
        $region16: #{tpu_custom_call.1} parent=11 // pred_fallthru
          _
        // Predicated region
        $region17: #{tpu_custom_call.1} parent=11 // pred_check
          %p213 = pneg %p85
        $region18: #{tpu_custom_call.1} parent=11 // pred_check_branch
          %215 = sbr.rel (%p213) target = $region20
        $region19: #{tpu_custom_call.1} parent=11 // pred_region
          _
        $region20: #{tpu_custom_call.1} parent=11 // pred_fallthru
          _
        // Predicated region
        $region21: #{tpu_custom_call.1} parent=11 // pred_check
          %p216 = pneg %p106
        $region22: #{tpu_custom_call.1} parent=11 // pred_check_branch
          %218 = sbr.rel (%p216) target = $region24
        $region23: #{tpu_custom_call.1} parent=11 // pred_region
          _
        $region24: #{tpu_custom_call.1} parent=11 // pred_fallthru
          _
        // Predicated region
        $region25: #{tpu_custom_call.1} parent=11 // pred_check
          %p219 = pneg %p127
        $region26: #{tpu_custom_call.1} parent=11 // pred_check_branch
          %221 = sbr.rel (%p219) target = $region28
        $region27: #{tpu_custom_call.1} parent=11 // pred_region
          _
        $region28: #{tpu_custom_call.1} parent=11 // pred_fallthru
          _
        // Predicated region
        $region29: #{tpu_custom_call.1} parent=11 // pred_check
          %p222 = pneg %p148
        $region30: #{tpu_custom_call.1} parent=11 // pred_check_branch
          %224 = sbr.rel (%p222) target = $region32
        $region31: #{tpu_custom_call.1} parent=11 // pred_region
          %s226 = ssub.s32 1024, 1024
          %227 = vsyncadd [#allocation3], %s226
          %s228 = sshll.u32 [#allocation2], 4
          %s229 = int_to_ptr.vmem [resolvable:$true] %s228
          %234 = dma.hbm_to_vmem [thread:$0]  %s5, 1024, %s229, [#allocation3], 64, 64, 4
        $region32: #{tpu_custom_call.1} parent=11 // pred_fallthru
          _
        // Predicated region
        $region33: #{tpu_custom_call.1} parent=11 // pred_check
          %p235 = pneg %p169
        $region34: #{tpu_custom_call.1} parent=11 // pred_check_branch
          %237 = sbr.rel (%p235) target = $region36
        $region35: #{tpu_custom_call.1} parent=11 // pred_region
          _
        $region36: #{tpu_custom_call.1} parent=11 // pred_fallthru
          _
      $region12: #{tpu_custom_call.1} parent=5 // pred_fallthru
        _
      %p238 = scmp.lt.s32.totalorder %s17, 2
      // Predicated region
      $region37: #{tpu_custom_call.1} parent=5 // pred_check
        %p239 = pneg %p238
      $region38: #{tpu_custom_call.1} parent=5 // pred_check_branch
        %241 = sbr.rel (%p239) target = $region40
      $region39: #{tpu_custom_call.1} parent=5 // pred_region
        // Predicated region
        $region41: #{tpu_custom_call.1} parent=39 // pred_check
          %p242 = pneg %p37
        $region42: #{tpu_custom_call.1} parent=39 // pred_check_branch
          %244 = sbr.rel (%p242) target = $region44
        $region43: #{tpu_custom_call.1} parent=39 // pred_region
          %p245 = scmp.lt.s32.totalorder %s17, 1
          %s246 = scalar_select %p245, %s17, 1
          %s247 = smul.addr %s246, 8
          %s248 = scalar_lea.vmem %s0, %s247
        $region44: #{tpu_custom_call.1} parent=39 // pred_fallthru
          _
      $region40: #{tpu_custom_call.1} parent=5 // pred_fallthru
        _
      %p249 = scmp.le.s32.totalorder 1, %s17
      %p250 = scmp.lt.s32.totalorder %s17, 3
      %p251 = pnand %p249, %p250
      %p252 = pneg %p251
      // Predicated region
      $region45: #{tpu_custom_call.1} parent=5 // pred_check
        _
      $region46: #{tpu_custom_call.1} parent=5 // pred_check_branch
        %254 = sbr.rel (%p251) target = $region48
      $region47: #{tpu_custom_call.1} parent=5 // pred_region
        %s255 = ssub.s32 %s17, 1
        // Predicated region
        $region49: #{tpu_custom_call.1} parent=47 // pred_check
          %p256 = pneg %p148
        $region50: #{tpu_custom_call.1} parent=47 // pred_check_branch
          %258 = sbr.rel (%p256) target = $region52
        $region51: #{tpu_custom_call.1} parent=47 // pred_region
          %259 = dma.done [#allocation3], 1024
        $region52: #{tpu_custom_call.1} parent=47 // pred_fallthru
          _
        %p260 = scmp.lt.s32.totalorder %s22, 1
        %s261 = scalar_select %p260, %s22, 1
        %s262 = smul.addr %s261, 8
        %s263 = scalar_lea.vmem %s0, %s262
        %p264 = pneg %p43
        %p265 = pneg %p40
        %p266 = pneg %p64
        %p267 = pneg %p61
        %p268 = pneg %p85
        %p269 = pneg %p82
        %p270 = pneg %p106
        %p271 = pneg %p103
        %p272 = pneg %p127
        %p273 = pneg %p124
        %p274 = pneg %p148
        %p275 = pneg %p145
        %p276 = pneg %p169
        %p277 = pneg %p166
        %p278 = pneg %p195
        %p279 = pneg %p192
        %s280 = sand.u32 %s182, 1
        %s281 = scalar_lea.sflag [#allocation4], %s280
        %s282 = sand.u32 %s182, 1
        %s283 = smul.addr %s282, 8
        %s284 = scalar_lea.vmem [#allocation5], %s283
        %p285 = scmp.lt.s32.totalorder %s22, 1
        %s286 = scalar_select %p285, %s22, 1
        %s287 = smul.addr %s286, 8
        %s288 = scalar_lea.vmem %s0, %s287
        %v290 = vld [vmem:[%s288] sm:$0xff]
        %v291 = vld [vmem:[%s1] sm:$0x1]
        %293 = vset.pattern.permute.xlu0 0
        %294 = vperm.xlu0 %293, %v290
        %v295 = vpop.permute.xlu0 %294
        %v298 = vlaneseq
        %v299 = vshrl.u32 %v298, 7
        %v300 = vsub.s32 0, %v299
        %v301 = vrot.slane %v291, %v300
        %v303 = vmul.f32 %v295, %v301
        %v304 = vand.u32 2147483647, %v303
        %vm305 = vcmp.le.f32.partialorder %v304, 0.7853982
        %vm306 = vcmp.lt.s32.totalorder %v303, 0
        %v307 = vand.u32 %v303, 2139095040
        %v308 = vshrl.u32 %v307, 23
        %v309 = vsub.s32 %v308, 127
        %v310 = vand.u32 2147483647, %v303
        %v311 = vand.u32 %v310, 8388607
        %v312 = vor.u32 %v311, 8388608
        %v313 = vsub.s32 0, %v312
        %v314 = vadd.s32 %v309, 1
        %vm315 = vcmp.gt.s32.totalorder %v314, 0
        %v316 = vsel %vm315, %v314, 0
        %v317 = vshrl.u32 %v316, 5
        %v318 = vand.u32 %v316, 31
        %v319 = vsub.s32 32, %v318
        %v320 = vshrl.u32 683565275, %v319
        %v321 = vshll.u32 683565275, %v318
        %v322 = vshrl.u32 2475754826, %v319
        %v323 = vor.u32 %v321, %v322
        %v324 = vshll.u32 2475754826, %v318
        %v325 = vshrl.u32 2131351028, %v319
        %v326 = vor.u32 %v324, %v325
        %v327 = vshll.u32 2131351028, %v318
        %v328 = vshrl.u32 2102212464, %v319
        %v329 = vor.u32 %v327, %v328
        %v330 = vshll.u32 2102212464, %v318
        %v331 = vshrl.u32 920167782, %v319
        %v332 = vor.u32 %v330, %v331
        %v333 = vshll.u32 920167782, %v318
        %v334 = vshrl.u32 1326507024, %v319
        %v335 = vor.u32 %v333, %v334
        %vm336 = vcmp.lt.s32.totalorder %v317, 1
        %vm337 = vcmp.lt.s32.totalorder %v317, 2
        %vm338 = vcmp.lt.s32.totalorder %v317, 3
        %vm339 = vcmp.lt.s32.totalorder %v317, 4
        %v340 = vsel %vm336, %v320, %v323
        %v341 = vsel %vm339, %v329, 2102212464
        %v342 = vsel %vm338, %v326, %v341
        %v343 = vsel %vm337, %v340, %v342
        %v344 = vsel %vm336, %v323, %v326
        %v345 = vsel %vm339, %v332, 920167782
        %v346 = vsel %vm338, %v329, %v345
        %v347 = vsel %vm337, %v344, %v346
        %v348 = vsel %vm336, %v326, %v329
        %v349 = vsel %vm339, %v335, 1326507024
        %v350 = vsel %vm338, %v332, %v349
        %v351 = vsel %vm337, %v348, %v350
        %v352 = vshll.u32 %v312, 8
        %v353 = vmul.u32.u64.compose %v352, %v351
        %v354 = vextract.low.u32 %v353
        %v355 = vextract.high.u32 %v353
        %v356 = vmul.u32.u64.compose %v352, %v347
        %v357 = vextract.low.u32 %v356
        %v358 = vextract.high.u32 %v356
        %v359 = vmul.u32 %v352, %v343
        %v360 = vadd.s32 %v355, %v357
        %vm361 = vc.u32 %v355, %v357
        %v362 = vadd.s32 %v358, 1
        %v363 = vsel %vm361, %v362, %v358
        %v364 = vadd.s32 %v359, %v363
        %v365 = vadd.s32 %v364, 536870912
        %v366 = vshrl.u32 %v365, 30
        %v367 = vshll.u32 %v366, 30
        %v368 = vsub.s32 %v364, %v367
        %vm369 = vcmp.lt.s32.totalorder %v368, 0
        %v370 = vsub.s32 0, %v368
        %v371 = vsel %vm369, %v370, %v368
        %v372 = vclz %v371
        %v373 = vsub.s32 %v372, 2
        %vm374 = vcmp.gt.s32.totalorder 0, %v373
        %v375 = vsel %vm374, 0, %v373
        %v376 = vsub.s32 32, %v375
        %v377 = vshll.u32 %v368, %v375
        %v378 = vshrl.u32 %v360, %v376
        %v379 = vor.u32 %v377, %v378
        %v380 = vsub.s32 4294967266, %v375
        %v381 = vadd.s32 %v380, 127
        %v382 = vshll.u32 %v381, 23
        %v383 = vor.u32 4788187, %v382
        %v384 = vand.u32 2147483647, %v383
        %v386 = vcvt.s32.f32 %v379
        %v387 = vmul.f32 %v386, %v384
        %v388 = vxor.u32 %v387, 2147483648
        %v389 = vsel %vm306, %v388, %v387
        %v390 = vsub.s32 4, %v366
        %v391 = vsel %vm306, %v390, %v366
        %v392 = vsel %vm305, %v303, %v389
        %v393 = vsel %vm305, 0, %v391
        %v394 = vcosq.f32.pop %v392
        %v395 = vsinq.f32.pop %v392
        %vm396 = vweird.f32 %v303
        %v397 = vadd.s32 %v393, 3
        %v398 = vand.u32 %v397, 3
        %vm399 = vcmp.lt.s32.totalorder %v398, 2
        %vm400 = vcmp.eq.s32.totalorder %v398, 0
        %v401 = vxor.u32 %v395, 2147483648
        %v402 = vsel %vm400, %v394, %v401
        %vm403 = vcmp.eq.s32.totalorder %v398, 2
        %v404 = vxor.u32 %v394, 2147483648
        %v405 = vsel %vm403, %v404, %v395
        %v406 = vsel %vm399, %v402, %v405
        %v407 = vsel %vm396, nan, %v406
        %v408 = vpack.c.bf16 %v407, %v407
        %v409 = vand.u32 2147483647, %v303
        %vm410 = vcmp.le.f32.partialorder %v409, 0.7853982
        %vm411 = vcmp.lt.s32.totalorder %v303, 0
        %v412 = vand.u32 %v303, 2139095040
        %v413 = vshrl.u32 %v412, 23
        %v414 = vsub.s32 %v413, 127
        %v415 = vand.u32 2147483647, %v303
        %v416 = vand.u32 %v415, 8388607
        %v417 = vor.u32 %v416, 8388608
        %v418 = vsub.s32 0, %v417
        %v419 = vadd.s32 %v414, 1
        %vm420 = vcmp.gt.s32.totalorder %v419, 0
        %v421 = vsel %vm420, %v419, 0
        %v422 = vshrl.u32 %v421, 5
        %v423 = vand.u32 %v421, 31
        %v424 = vsub.s32 32, %v423
        %v425 = vshrl.u32 683565275, %v424
        %v426 = vshll.u32 683565275, %v423
        %v427 = vshrl.u32 2475754826, %v424
        %v428 = vor.u32 %v426, %v427
        %v429 = vshll.u32 2475754826, %v423
        %v430 = vshrl.u32 2131351028, %v424
        %v431 = vor.u32 %v429, %v430
        %v432 = vshll.u32 2131351028, %v423
        %v433 = vshrl.u32 2102212464, %v424
        %v434 = vor.u32 %v432, %v433
        %v435 = vshll.u32 2102212464, %v423
        %v436 = vshrl.u32 920167782, %v424
        %v437 = vor.u32 %v435, %v436
        %v438 = vshll.u32 920167782, %v423
        %v439 = vshrl.u32 1326507024, %v424
        %v440 = vor.u32 %v438, %v439
        %vm441 = vcmp.lt.s32.totalorder %v422, 1
        %vm442 = vcmp.lt.s32.totalorder %v422, 2
        %vm443 = vcmp.lt.s32.totalorder %v422, 3
        %vm444 = vcmp.lt.s32.totalorder %v422, 4
        %v445 = vsel %vm441, %v425, %v428
        %v446 = vsel %vm444, %v434, 2102212464
        %v447 = vsel %vm443, %v431, %v446
        %v448 = vsel %vm442, %v445, %v447
        %v449 = vsel %vm441, %v428, %v431
        %v450 = vsel %vm444, %v437, 920167782
        %v451 = vsel %vm443, %v434, %v450
        %v452 = vsel %vm442, %v449, %v451
        %v453 = vsel %vm441, %v431, %v434
        %v454 = vsel %vm444, %v440, 1326507024
        %v455 = vsel %vm443, %v437, %v454
        %v456 = vsel %vm442, %v453, %v455
        %v457 = vshll.u32 %v417, 8
        %v458 = vmul.u32.u64.compose %v457, %v456
        %v459 = vextract.low.u32 %v458
        %v460 = vextract.high.u32 %v458
        %v461 = vmul.u32.u64.compose %v457, %v452
        %v462 = vextract.low.u32 %v461
        %v463 = vextract.high.u32 %v461
        %v464 = vmul.u32 %v457, %v448
        %v465 = vadd.s32 %v460, %v462
        %vm466 = vc.u32 %v460, %v462
        %v467 = vadd.s32 %v463, 1
        %v468 = vsel %vm466, %v467, %v463
        %v469 = vadd.s32 %v464, %v468
        %v470 = vadd.s32 %v469, 536870912
        %v471 = vshrl.u32 %v470, 30
        %v472 = vshll.u32 %v471, 30
        %v473 = vsub.s32 %v469, %v472
        %vm474 = vcmp.lt.s32.totalorder %v473, 0
        %v475 = vsub.s32 0, %v473
        %v476 = vsel %vm474, %v475, %v473
        %v477 = vclz %v476
        %v478 = vsub.s32 %v477, 2
        %vm479 = vcmp.gt.s32.totalorder 0, %v478
        %v480 = vsel %vm479, 0, %v478
        %v481 = vsub.s32 32, %v480
        %v482 = vshll.u32 %v473, %v480
        %v483 = vshrl.u32 %v465, %v481
        %v484 = vor.u32 %v482, %v483
        %v485 = vsub.s32 4294967266, %v480
        %v486 = vadd.s32 %v485, 127
        %v487 = vshll.u32 %v486, 23
        %v488 = vor.u32 4788187, %v487
        %v489 = vand.u32 2147483647, %v488
        %v491 = vcvt.s32.f32 %v484
        %v492 = vmul.f32 %v491, %v489
        %v493 = vxor.u32 %v492, 2147483648
        %v494 = vsel %vm411, %v493, %v492
        %v495 = vsub.s32 4, %v471
        %v496 = vsel %vm411, %v495, %v471
        %v497 = vsel %vm410, %v303, %v494
        %v498 = vsel %vm410, 0, %v496
        %v499 = vcosq.f32.pop %v497
        %v500 = vsinq.f32.pop %v497
        %vm501 = vweird.f32 %v303
        %v502 = vand.u32 %v498, 3
        %vm503 = vcmp.lt.s32.totalorder %v502, 2
        %vm504 = vcmp.eq.s32.totalorder %v502, 0
        %v505 = vxor.u32 %v500, 2147483648
        %v506 = vsel %vm504, %v499, %v505
        %vm507 = vcmp.eq.s32.totalorder %v502, 2
        %v508 = vxor.u32 %v499, 2147483648
        %v509 = vsel %vm507, %v508, %v500
        %v510 = vsel %vm503, %v506, %v509
        %v511 = vsel %vm501, nan, %v510
        %v512 = vpack.c.bf16 %v511, %v511
        %v513 = vld [vmem:[%s2] sm:$0xf]
        %v514 = vld [vmem:[%s2 + $0x4] sm:$0xf]
        %v515 = vld [vmem:[%s3] sm:$0xf]
        %v516 = vld [vmem:[%s3 + $0x4] sm:$0xf]
        %v519 = vunpack.c.l.b16 %v515
        %v520 = vunpack.c.l.b16 %v516
        %v521 = vpack.c.b16 %v520, %v519
        %vm523 = vcmask 130048
        %v525 = vsel %vm523, %v512, 0
        %527 = vmatprep.subr.bf16.mxu0 0
        %528 = vmatpush1.bf16.msra.mxu0 %v521
        %529 = vmatprep.subr.bf16.mxu0 0
        %530 = vmatpush1.bf16.msra.mxu0 0
        %531 = vmatprep.subr.bf16.mxu0 0
        %532 = vmatpush1.bf16.msra.mxu0 0
        %533 = vmatprep.subr.bf16.mxu0 0
        %534 = vmatpush1.bf16.msra.mxu0 0
        %535 = vmatprep.subr.bf16.mxu0 0
        %536 = vmatpush1.bf16.msra.mxu0 0
        %537 = vmatprep.subr.bf16.mxu0 0
        %538 = vmatpush1.bf16.msra.mxu0 0
        %539 = vmatprep.subr.bf16.mxu0 0
        %540 = vmatpush1.bf16.msra.mxu0 0
        %541 = vmatprep.subr.bf16.mxu0 0
        %542 = vmatpush1.bf16.msra.mxu0 0
        %543 = vmatprep.subr.bf16.mxu0 0
        %544 = vmatpush1.bf16.msra.mxu0 0
        %545 = vmatprep.subr.bf16.mxu0 0
        %546 = vmatpush1.bf16.msra.mxu0 0
        %547 = vmatprep.subr.bf16.mxu0 0
        %548 = vmatpush1.bf16.msra.mxu0 0
        %549 = vmatprep.subr.bf16.mxu0 0
        %550 = vmatpush1.bf16.msra.mxu0 0
        %551 = vmatprep.subr.bf16.mxu0 0
        %552 = vmatpush1.bf16.msra.mxu0 0
        %553 = vmatprep.subr.bf16.mxu0 0
        %554 = vmatpush1.bf16.msra.mxu0 0
        %555 = vmatprep.subr.bf16.mxu0 0
        %556 = vmatpush1.bf16.msra.mxu0 0
        %557 = vmatprep.subr.bf16.mxu0 0
        %558 = vmatpush1.bf16.msra.mxu0 0
        %559 = vmatprep.mubr.bf16.mxu0 0
        %560 = vmatmul.mubr.bf16.gmra.mrb[0].mxu0 %v525
        %v561 = vpop.f32.mrb[0].mxu0
        %v562 = vadd.f32 0.0, %v561
        %v563 = vpop.f32.mrb[0].mxu0
        %v564 = vpop.f32.mrb[0].mxu0
        %v565 = vpop.f32.mrb[0].mxu0
        %566 = vdwg.mxu0
        %v569 = vunpack.c.l.b16 %v513
        %v570 = vunpack.c.l.b16 %v514
        %v571 = vpack.c.b16 %v570, %v569
        %v574 = vsel %vm523, %v408, 0
        %576 = vmatprep.subr.bf16.mxu0 0
        %577 = vmatpush1.bf16.msra.mxu0 %v571
        %578 = vmatprep.subr.bf16.mxu0 0
        %579 = vmatpush1.bf16.msra.mxu0 0
        %580 = vmatprep.subr.bf16.mxu0 0
        %581 = vmatpush1.bf16.msra.mxu0 0
        %582 = vmatprep.subr.bf16.mxu0 0
        %583 = vmatpush1.bf16.msra.mxu0 0
        %584 = vmatprep.subr.bf16.mxu0 0
        %585 = vmatpush1.bf16.msra.mxu0 0
        %586 = vmatprep.subr.bf16.mxu0 0
        %587 = vmatpush1.bf16.msra.mxu0 0
        %588 = vmatprep.subr.bf16.mxu0 0
        %589 = vmatpush1.bf16.msra.mxu0 0
        %590 = vmatprep.subr.bf16.mxu0 0
        %591 = vmatpush1.bf16.msra.mxu0 0
        %592 = vmatprep.subr.bf16.mxu0 0
        %593 = vmatpush1.bf16.msra.mxu0 0
        %594 = vmatprep.subr.bf16.mxu0 0
        %595 = vmatpush1.bf16.msra.mxu0 0
        %596 = vmatprep.subr.bf16.mxu0 0
        %597 = vmatpush1.bf16.msra.mxu0 0
        %598 = vmatprep.subr.bf16.mxu0 0
        %599 = vmatpush1.bf16.msra.mxu0 0
        %600 = vmatprep.subr.bf16.mxu0 0
        %601 = vmatpush1.bf16.msra.mxu0 0
        %602 = vmatprep.subr.bf16.mxu0 0
        %603 = vmatpush1.bf16.msra.mxu0 0
        %604 = vmatprep.subr.bf16.mxu0 0
        %605 = vmatpush1.bf16.msra.mxu0 0
        %606 = vmatprep.subr.bf16.mxu0 0
        %607 = vmatpush1.bf16.msra.mxu0 0
        %608 = vmatprep.mubr.bf16.mxu0 0
        %609 = vmatmul.mubr.bf16.gmra.mrb[0].mxu0 %v574
        %v610 = vpop.f32.mrb[0].mxu0
        %v611 = vadd.f32 %v562, %v610
        %v612 = vpop.f32.mrb[0].mxu0
        %v613 = vpop.f32.mrb[0].mxu0
        %v614 = vpop.f32.mrb[0].mxu0
        %615 = vdwg.mxu0
        %v616 = vld [vmem:[%s4] sm:$0x1]
        %v618 = vlaneseq
        %v619 = vshrl.u32 %v618, 7
        %v620 = vsub.s32 0, %v619
        %v621 = vrot.slane %v616, %v620
        %v623 = vadd.f32 %v611, %v621
        %v624 = vmul.f32 %v623, 0.5
        %v625 = vmul.f32 %v623, 0.70710677
        %v626 = verf.f32.pop %v625
        %v627 = vadd.f32 %v626, 1.0
        %v628 = vmul.f32 %v624, %v627
        %v629 = vpack.c.bf16 %v628, %v628
        %v630 = vld [vmem:[#allocation2] sm:$0xf]
        %v631 = vld [vmem:[#allocation2 + $0x4] sm:$0xf]
        %v632 = vld [vmem:[#allocation2 + $0x8] sm:$0xf]
        %v633 = vld [vmem:[#allocation2 + $0xc] sm:$0xf]
        %v634 = vld [vmem:[#allocation2 + $0x10] sm:$0xf]
        %v635 = vld [vmem:[#allocation2 + $0x14] sm:$0xf]
        %v636 = vld [vmem:[#allocation2 + $0x18] sm:$0xf]
        %v637 = vld [vmem:[#allocation2 + $0x1c] sm:$0xf]
        %v638 = vld [vmem:[#allocation2 + $0x20] sm:$0xf]
        %v639 = vld [vmem:[#allocation2 + $0x24] sm:$0xf]
        %v640 = vld [vmem:[#allocation2 + $0x28] sm:$0xf]
        %v641 = vld [vmem:[#allocation2 + $0x2c] sm:$0xf]
        %v642 = vld [vmem:[#allocation2 + $0x30] sm:$0xf]
        %v643 = vld [vmem:[#allocation2 + $0x34] sm:$0xf]
        %v644 = vld [vmem:[#allocation2 + $0x38] sm:$0xf]
        %v645 = vld [vmem:[#allocation2 + $0x3c] sm:$0xf]
        %v646 = vld [vmem:[%s6] sm:$0x1]
        %v648 = vlaneseq
        %v649 = vshrl.u32 %v648, 7
        %v650 = vsub.s32 0, %v649
        %v651 = vrot.slane %v646, %v650
        %v669 = vunpack.c.l.b16 %v630
        %v670 = vunpack.c.l.b16 %v631
        %v671 = vunpack.c.l.b16 %v632
        %v672 = vunpack.c.l.b16 %v633
        %v673 = vunpack.c.l.b16 %v634
        %v674 = vunpack.c.l.b16 %v635
        %v675 = vunpack.c.l.b16 %v636
        %v676 = vunpack.c.l.b16 %v637
        %v677 = vunpack.c.l.b16 %v638
        %v678 = vunpack.c.l.b16 %v639
        %v679 = vunpack.c.l.b16 %v640
        %v680 = vunpack.c.l.b16 %v641
        %v681 = vunpack.c.l.b16 %v642
        %v682 = vunpack.c.l.b16 %v643
        %v683 = vunpack.c.l.b16 %v644
        %v684 = vunpack.c.l.b16 %v645
        %v685 = vpack.c.b16 %v670, %v669
        %v686 = vpack.c.b16 %v672, %v671
        %v687 = vpack.c.b16 %v674, %v673
        %v688 = vpack.c.b16 %v676, %v675
        %v689 = vpack.c.b16 %v678, %v677
        %v690 = vpack.c.b16 %v680, %v679
        %v691 = vpack.c.b16 %v682, %v681
        %v692 = vpack.c.b16 %v684, %v683
        %701 = vmatprep.subr.bf16.mxu0 0
        %702 = vmatpush1.bf16.msra.mxu0 %v685
        %703 = vmatprep.subr.bf16.mxu0 0
        %704 = vmatpush1.bf16.msra.mxu0 %v686
        %705 = vmatprep.subr.bf16.mxu0 0
        %706 = vmatpush1.bf16.msra.mxu0 %v687
        %707 = vmatprep.subr.bf16.mxu0 0
        %708 = vmatpush1.bf16.msra.mxu0 %v688
        %709 = vmatprep.subr.bf16.mxu0 0
        %710 = vmatpush1.bf16.msra.mxu0 %v689
        %711 = vmatprep.subr.bf16.mxu0 0
        %712 = vmatpush1.bf16.msra.mxu0 %v690
        %713 = vmatprep.subr.bf16.mxu0 0
        %714 = vmatpush1.bf16.msra.mxu0 %v691
        %715 = vmatprep.subr.bf16.mxu0 0
        %716 = vmatpush1.bf16.msra.mxu0 %v692
        %717 = vmatprep.subr.bf16.mxu0 0
        %718 = vmatpush1.bf16.msra.mxu0 0
        %719 = vmatprep.subr.bf16.mxu0 0
        %720 = vmatpush1.bf16.msra.mxu0 0
        %721 = vmatprep.subr.bf16.mxu0 0
        %722 = vmatpush1.bf16.msra.mxu0 0
        %723 = vmatprep.subr.bf16.mxu0 0
        %724 = vmatpush1.bf16.msra.mxu0 0
        %725 = vmatprep.subr.bf16.mxu0 0
        %726 = vmatpush1.bf16.msra.mxu0 0
        %727 = vmatprep.subr.bf16.mxu0 0
        %728 = vmatpush1.bf16.msra.mxu0 0
        %729 = vmatprep.subr.bf16.mxu0 0
        %730 = vmatpush1.bf16.msra.mxu0 0
        %731 = vmatprep.subr.bf16.mxu0 0
        %732 = vmatpush1.bf16.msra.mxu0 0
        %733 = vmatprep.mubr.bf16.mxu0 0
        %734 = vmatmul.mubr.bf16.gmra.mrb[0].mxu0 %v629
        %v735 = vpop.f32.mrb[0].mxu0
        %v736 = vadd.f32 %v651, %v735
        %v737 = vpop.f32.mrb[0].mxu0
        %v738 = vpop.f32.mrb[0].mxu0
        %v739 = vpop.f32.mrb[0].mxu0
        %740 = vdwg.mxu0
        %741 = vst [vmem:[%s284] sm:$0xff] %v736
        %s742 = sand.u32 %s182, 1
        %s743 = scalar_lea.sflag [#allocation4], %s742
        %s744 = sand.u32 %s182, 1
        %s745 = smul.addr %s744, 8
        %s746 = scalar_lea.vmem [#allocation5], %s745
        // Predicated region
        $region53: #{tpu_custom_call.1} parent=47 // pred_check
          %p747 = pneg %p192
        $region54: #{tpu_custom_call.1} parent=47 // pred_check_branch
          %749 = sbr.rel (%p747) target = $region56
        $region55: #{tpu_custom_call.1} parent=47 // pred_region
          %s751 = ssub.s32 128, 128
          %752 = vsyncadd %s743, %s751
          %s753 = smul.addr %s22, 128
          %s754 = scalar_lea.hbm %s7, %s753
          %s756 = sshll.u32 %s746, 4
          %s757 = int_to_ptr.vmem [resolvable:$true] %s756
          %759 = dma.vmem_to_hbm [thread:$0]  %s757, 128, %s754, %s743
        $region56: #{tpu_custom_call.1} parent=47 // pred_fallthru
          _
      $region48: #{tpu_custom_call.1} parent=5 // pred_fallthru
        _
      %p760 = scmp.le.s32.totalorder 2, %s17
      // Predicated region
      $region57: #{tpu_custom_call.1} parent=5 // pred_check
        %p761 = pneg %p760
      $region58: #{tpu_custom_call.1} parent=5 // pred_check_branch
        %763 = sbr.rel (%p761) target = $region60
      $region59: #{tpu_custom_call.1} parent=5 // pred_region
        %s764 = ssub.s32 %s17, 2
        // Predicated region
        $region61: #{tpu_custom_call.1} parent=59 // pred_check
          %p765 = pneg %p198
        $region62: #{tpu_custom_call.1} parent=59 // pred_check_branch
          %767 = sbr.rel (%p765) target = $region64
        $region63: #{tpu_custom_call.1} parent=59 // pred_region
          %s768 = sand.u32 %s183, 1
          %s769 = scalar_lea.sflag [#allocation4], %s768
          %s770 = sand.u32 %s183, 1
          %s771 = smul.addr %s770, 8
          %s772 = scalar_lea.vmem [#allocation5], %s771
          %773 = dma.done %s769, 128
        $region64: #{tpu_custom_call.1} parent=59 // pred_fallthru
          _
      $region60: #{tpu_custom_call.1} parent=5 // pred_fallthru
        _
    $region6: #{tpu_custom_call.1} parent=1 // loop_footer
      %s21 = sadd.s32 1, %s17
    $region7: #{tpu_custom_call.1} parent=1 // loop_footer_branch
      %16 = sbr.rel target = $region3
    $region8: #{tpu_custom_call.1} parent=1 // loop_exit
      _
    %774 = vsyncpa [#allocation3], 1
    %s775 = scalar_lea.sflag [#allocation3], 1
    %776 = vsyncpa %s775, 1
    %777 = vsyncpa [#allocation4], 1
    %s778 = scalar_lea.sflag [#allocation4], 1
    %779 = vsyncpa %s778, 1

// kernel: tpu_custom_call.1
$region0: #{tpu_custom_call.1}
  #allocation0 [shape = 'u32[]', space=smem, size = 0x4, offset = 0x4, fixed_abs, tag = 'smem constant byte address 0x4 - core index']
  #allocation1 [shape = 'u32[144,128]{1,0:T(1,128)}', space=vmem, size = 0x12000, scoped, tag = 'internal scratch']
  %s0 = inlined_call_operand.vmem [shape: f32[16,1], index: 0, kind: input, shape index: {}]
  %s1 = inlined_call_operand.vmem [shape: f32[1,16], index: 1, kind: input, shape index: {}]
  %s2 = inlined_call_operand.vmem [shape: bf16[16,128], index: 2, kind: input, shape index: {}]
  %s3 = inlined_call_operand.vmem [shape: bf16[16,128], index: 3, kind: input, shape index: {}]
  %s4 = inlined_call_operand.vmem [shape: f32[1,128], index: 4, kind: input, shape index: {}]
  %s5 = inlined_call_operand.hbm [shape: bf16[128,128], index: 5, kind: input, shape index: {}]
  %s6 = inlined_call_operand.vmem [shape: f32[1,128], index: 6, kind: input, shape index: {}]
  %s7 = inlined_call_operand.hbm [shape: f32[16,128], index: 7, kind: output, shape index: {}]
  %s8 = sld [smem:[#allocation0]]
  $region65: #{tpu_custom_call.1} parent=0
    _
  %s10 = ssub.s32 1, %s8
  %s11 = scalar_select 0, %s10, %s8
  $region1: #{tpu_custom_call.1} parent=0
    #allocation2 [shape = 'u8[32768]{0}', space=vmem, size = 0x8000, scoped, tag = 'input window, operand 5, single buffered']
    #allocation3 [shape = 's32[2]{0}', space=sflag, size = 0x8, scoped, tag = 'scoped memory for tpu_custom_call.1']
    #allocation4 [shape = 's32[2]{0}', space=sflag, size = 0x8, scoped, tag = 'scoped memory for tpu_custom_call.1']
    #allocation5 [shape = 'u8[8192]{0}', space=vmem, size = 0x2000, scoped, tag = 'output window, operand 0']
    %12 = vsyncpa [#allocation3], 0
    %13 = vsyncpa [#allocation4], 0
    %s14 = scalar_lea.sflag [#allocation4], 1
    %15 = vsyncpa %s14, 0
    loop: start=0, step=1, limit=4
    $region2: #{tpu_custom_call.1} parent=1 // loop_pre_header
      _
    $region3: #{tpu_custom_call.1} parent=1 // loop_header
      %s17 = sphi 0, %s21
      %p18 = scmp.ge.s32.totalorder %s17, 4
      %s27 = sphi 0, %s29
      %s30 = sphi 0, %s27
      %s31 = sphi 0, %s30
      %s47 = sphi 0, %s31
      %s51 = sphi 0, %s51
      %s53 = sphi 0, %s51
      %s54 = sphi 0, %s53
      %s68 = sphi 0, %s54
      %s72 = sphi 0, %s72
      %s74 = sphi 0, %s72
      %s75 = sphi 0, %s74
      %s89 = sphi 0, %s75
      %s93 = sphi 0, %s93
      %s95 = sphi 0, %s93
      %s96 = sphi 0, %s95
      %s110 = sphi 0, %s96
      %s114 = sphi 0, %s114
      %s116 = sphi 0, %s114
      %s117 = sphi 0, %s116
      %s131 = sphi 0, %s117
      %s135 = sphi 0, %s135
      %s137 = sphi 0, %s135
      %s138 = sphi 0, %s137
      %s152 = sphi 0, %s138
      %s156 = sphi 0, %s156
      %s158 = sphi 0, %s156
      %s159 = sphi 0, %s158
      %s173 = sphi 0, %s159
      %s179 = sphi 0, %s181
      %s182 = sphi 0, %s179
      %s183 = sphi 0, %s182
      %s199 = sphi 0, %s183
    $region4: #{tpu_custom_call.1} parent=1 // loop_header_branch
      %20 = sbr.rel (%p18) target = $region8
    $region5: #{tpu_custom_call.1} parent=1 // loop_body
      %s22 = ssub.s32 %s17, 1
      %s23 = ssub.s32 %s17, 2
      %s24 = sadd.s32 %s17, 1
      %s25 = ssub.s32 %s17, %s24
      %p26 = scmp.eq.s32.totalorder %s25, 0
      %s28 = sadd.s32 %s27, 1
      %s29 = scalar_select %p26, %s27, %s28
      %p32 = pneg %p26
      %p33 = scmp.eq.s32.totalorder %s17, 1
      %p34 = por %p32, %p33
      %p35 = scmp.ne.s32.totalorder %s27, %s30
      %p36 = scmp.eq.s32.totalorder %s17, 0
      %p37 = por %p35, %p36
      %p38 = scmp.ne.s32.totalorder %s27, %s30
      %p39 = scmp.eq.s32.totalorder %s22, 1
      %p40 = por %p38, %p39
      %p41 = scmp.ne.s32.totalorder %s30, %s31
      %p42 = scmp.eq.s32.totalorder %s22, 0
      %p43 = por %p41, %p42
      %p44 = scmp.ne.s32.totalorder %s30, %s31
      %p45 = scmp.eq.s32.totalorder %s23, 1
      %p46 = por %p44, %p45
      %p48 = scmp.ne.s32.totalorder %s31, %s47
      %p49 = scmp.eq.s32.totalorder %s23, 0
      %p50 = por %p48, %p49
      %s52 = sadd.s32 %s51, 1
      %p55 = scmp.eq.s32.totalorder %s17, 1
      %p56 = scmp.ne.s32.totalorder %s51, %s53
      %p57 = scmp.eq.s32.totalorder %s17, 0
      %p58 = por %p56, %p57
      %p59 = scmp.ne.s32.totalorder %s51, %s53
      %p60 = scmp.eq.s32.totalorder %s22, 1
      %p61 = por %p59, %p60
      %p62 = scmp.ne.s32.totalorder %s53, %s54
      %p63 = scmp.eq.s32.totalorder %s22, 0
      %p64 = por %p62, %p63
      %p65 = scmp.ne.s32.totalorder %s53, %s54
      %p66 = scmp.eq.s32.totalorder %s23, 1
      %p67 = por %p65, %p66
      %p69 = scmp.ne.s32.totalorder %s54, %s68
      %p70 = scmp.eq.s32.totalorder %s23, 0
      %p71 = por %p69, %p70
      %s73 = sadd.s32 %s72, 1
      %p76 = scmp.eq.s32.totalorder %s17, 1
      %p77 = scmp.ne.s32.totalorder %s72, %s74
      %p78 = scmp.eq.s32.totalorder %s17, 0
      %p79 = por %p77, %p78
      %p80 = scmp.ne.s32.totalorder %s72, %s74
      %p81 = scmp.eq.s32.totalorder %s22, 1
      %p82 = por %p80, %p81
      %p83 = scmp.ne.s32.totalorder %s74, %s75
      %p84 = scmp.eq.s32.totalorder %s22, 0
      %p85 = por %p83, %p84
      %p86 = scmp.ne.s32.totalorder %s74, %s75
      %p87 = scmp.eq.s32.totalorder %s23, 1
      %p88 = por %p86, %p87
      %p90 = scmp.ne.s32.totalorder %s75, %s89
      %p91 = scmp.eq.s32.totalorder %s23, 0
      %p92 = por %p90, %p91
      %s94 = sadd.s32 %s93, 1
      %p97 = scmp.eq.s32.totalorder %s17, 1
      %p98 = scmp.ne.s32.totalorder %s93, %s95
      %p99 = scmp.eq.s32.totalorder %s17, 0
      %p100 = por %p98, %p99
      %p101 = scmp.ne.s32.totalorder %s93, %s95
      %p102 = scmp.eq.s32.totalorder %s22, 1
      %p103 = por %p101, %p102
      %p104 = scmp.ne.s32.totalorder %s95, %s96
      %p105 = scmp.eq.s32.totalorder %s22, 0
      %p106 = por %p104, %p105
      %p107 = scmp.ne.s32.totalorder %s95, %s96
      %p108 = scmp.eq.s32.totalorder %s23, 1
      %p109 = por %p107, %p108
      %p111 = scmp.ne.s32.totalorder %s96, %s110
      %p112 = scmp.eq.s32.totalorder %s23, 0
      %p113 = por %p111, %p112
      %s115 = sadd.s32 %s114, 1
      %p118 = scmp.eq.s32.totalorder %s17, 1
      %p119 = scmp.ne.s32.totalorder %s114, %s116
      %p120 = scmp.eq.s32.totalorder %s17, 0
      %p121 = por %p119, %p120
      %p122 = scmp.ne.s32.totalorder %s114, %s116
      %p123 = scmp.eq.s32.totalorder %s22, 1
      %p124 = por %p122, %p123
      %p125 = scmp.ne.s32.totalorder %s116, %s117
      %p126 = scmp.eq.s32.totalorder %s22, 0
      %p127 = por %p125, %p126
      %p128 = scmp.ne.s32.totalorder %s116, %s117
      %p129 = scmp.eq.s32.totalorder %s23, 1
      %p130 = por %p128, %p129
      %p132 = scmp.ne.s32.totalorder %s117, %s131
      %p133 = scmp.eq.s32.totalorder %s23, 0
      %p134 = por %p132, %p133
      %s136 = sadd.s32 %s135, 1
      %p139 = scmp.eq.s32.totalorder %s17, 1
      %p140 = scmp.ne.s32.totalorder %s135, %s137
      %p141 = scmp.eq.s32.totalorder %s17, 0
      %p142 = por %p140, %p141
      %p143 = scmp.ne.s32.totalorder %s135, %s137
      %p144 = scmp.eq.s32.totalorder %s22, 1
      %p145 = por %p143, %p144
      %p146 = scmp.ne.s32.totalorder %s137, %s138
      %p147 = scmp.eq.s32.totalorder %s22, 0
      %p148 = por %p146, %p147
      %p149 = scmp.ne.s32.totalorder %s137, %s138
      %p150 = scmp.eq.s32.totalorder %s23, 1
      %p151 = por %p149, %p150
      %p153 = scmp.ne.s32.totalorder %s138, %s152
      %p154 = scmp.eq.s32.totalorder %s23, 0
      %p155 = por %p153, %p154
      %s157 = sadd.s32 %s156, 1
      %p160 = scmp.eq.s32.totalorder %s17, 1
      %p161 = scmp.ne.s32.totalorder %s156, %s158
      %p162 = scmp.eq.s32.totalorder %s17, 0
      %p163 = por %p161, %p162
      %p164 = scmp.ne.s32.totalorder %s156, %s158
      %p165 = scmp.eq.s32.totalorder %s22, 1
      %p166 = por %p164, %p165
      %p167 = scmp.ne.s32.totalorder %s158, %s159
      %p168 = scmp.eq.s32.totalorder %s22, 0
      %p169 = por %p167, %p168
      %p170 = scmp.ne.s32.totalorder %s158, %s159
      %p171 = scmp.eq.s32.totalorder %s23, 1
      %p172 = por %p170, %p171
      %p174 = scmp.ne.s32.totalorder %s159, %s173
      %p175 = scmp.eq.s32.totalorder %s23, 0
      %p176 = por %p174, %p175
      %s177 = ssub.s32 %s17, %s24
      %p178 = scmp.eq.s32.totalorder %s177, 0
      %s180 = sadd.s32 %s179, 1
      %s181 = scalar_select %p178, %s179, %s180
      %p184 = pneg %p178
      %p185 = scmp.eq.s32.totalorder %s17, 1
      %p186 = por %p184, %p185
      %p187 = scmp.ne.s32.totalorder %s179, %s182
      %p188 = scmp.eq.s32.totalorder %s17, 0
      %p189 = por %p187, %p188
      %p190 = scmp.ne.s32.totalorder %s179, %s182
      %p191 = scmp.eq.s32.totalorder %s22, 1
      %p192 = por %p190, %p191
      %p193 = scmp.ne.s32.totalorder %s182, %s183
      %p194 = scmp.eq.s32.totalorder %s22, 0
      %p195 = por %p193, %p194
      %p196 = scmp.ne.s32.totalorder %s182, %s183
      %p197 = scmp.eq.s32.totalorder %s23, 1
      %p198 = por %p196, %p197
      %p200 = scmp.ne.s32.totalorder %s183, %s199
      %p201 = scmp.eq.s32.totalorder %s23, 0
      %p202 = por %p200, %p201
      %p203 = scmp.le.s32.totalorder 1, %s17
      %p204 = scmp.lt.s32.totalorder %s17, 3
      %p205 = pnand %p203, %p204
      %p206 = pneg %p205
      // Predicated region
      $region9: #{tpu_custom_call.1} parent=5 // pred_check
        _
      $region10: #{tpu_custom_call.1} parent=5 // pred_check_branch
        %208 = sbr.rel (%p205) target = $region12
      $region11: #{tpu_custom_call.1} parent=5 // pred_region
        %s209 = ssub.s32 %s17, 1
        // Predicated region
        $region13: #{tpu_custom_call.1} parent=11 // pred_check
          %p210 = pneg %p64
        $region14: #{tpu_custom_call.1} parent=11 // pred_check_branch
          %212 = sbr.rel (%p210) target = $region16
        $region15: #{tpu_custom_call.1} parent=11 // pred_region
          _
        $region16: #{tpu_custom_call.1} parent=11 // pred_fallthru
          _
        // Predicated region
        $region17: #{tpu_custom_call.1} parent=11 // pred_check
          %p213 = pneg %p85
        $region18: #{tpu_custom_call.1} parent=11 // pred_check_branch
          %215 = sbr.rel (%p213) target = $region20
        $region19: #{tpu_custom_call.1} parent=11 // pred_region
          _
        $region20: #{tpu_custom_call.1} parent=11 // pred_fallthru
          _
        // Predicated region
        $region21: #{tpu_custom_call.1} parent=11 // pred_check
          %p216 = pneg %p106
        $region22: #{tpu_custom_call.1} parent=11 // pred_check_branch
          %218 = sbr.rel (%p216) target = $region24
        $region23: #{tpu_custom_call.1} parent=11 // pred_region
          _
        $region24: #{tpu_custom_call.1} parent=11 // pred_fallthru
          _
        // Predicated region
        $region25: #{tpu_custom_call.1} parent=11 // pred_check
          %p219 = pneg %p127
        $region26: #{tpu_custom_call.1} parent=11 // pred_check_branch
          %221 = sbr.rel (%p219) target = $region28
        $region27: #{tpu_custom_call.1} parent=11 // pred_region
          _
        $region28: #{tpu_custom_call.1} parent=11 // pred_fallthru
          _
        // Predicated region
        $region29: #{tpu_custom_call.1} parent=11 // pred_check
          %p222 = pneg %p148
        $region30: #{tpu_custom_call.1} parent=11 // pred_check_branch
          %224 = sbr.rel (%p222) target = $region32
        $region31: #{tpu_custom_call.1} parent=11 // pred_region
          %s226 = ssub.s32 1024, 1024
          %227 = vsyncadd [#allocation3], %s226
          %s228 = sshll.u32 [#allocation2], 4
          %s229 = int_to_ptr.vmem [resolvable:$true] %s228
          %234 = dma.hbm_to_vmem [thread:$0]  %s5, 1024, %s229, [#allocation3], 64, 64, 4
        $region32: #{tpu_custom_call.1} parent=11 // pred_fallthru
          _
        // Predicated region
        $region33: #{tpu_custom_call.1} parent=11 // pred_check
          %p235 = pneg %p169
        $region34: #{tpu_custom_call.1} parent=11 // pred_check_branch
          %237 = sbr.rel (%p235) target = $region36
        $region35: #{tpu_custom_call.1} parent=11 // pred_region
          _
        $region36: #{tpu_custom_call.1} parent=11 // pred_fallthru
          _
      $region12: #{tpu_custom_call.1} parent=5 // pred_fallthru
        _
      %p238 = scmp.lt.s32.totalorder %s17, 2
      // Predicated region
      $region37: #{tpu_custom_call.1} parent=5 // pred_check
        %p239 = pneg %p238
      $region38: #{tpu_custom_call.1} parent=5 // pred_check_branch
        %241 = sbr.rel (%p239) target = $region40
      $region39: #{tpu_custom_call.1} parent=5 // pred_region
        // Predicated region
        $region41: #{tpu_custom_call.1} parent=39 // pred_check
          %p242 = pneg %p37
        $region42: #{tpu_custom_call.1} parent=39 // pred_check_branch
          %244 = sbr.rel (%p242) target = $region44
        $region43: #{tpu_custom_call.1} parent=39 // pred_region
          %p245 = scmp.lt.s32.totalorder %s17, 1
          %s246 = scalar_select %p245, %s17, 1
          %s247 = smul.addr %s246, 8
          %s248 = scalar_lea.vmem %s0, %s247
        $region44: #{tpu_custom_call.1} parent=39 // pred_fallthru
          _
      $region40: #{tpu_custom_call.1} parent=5 // pred_fallthru
        _
      %p249 = scmp.le.s32.totalorder 1, %s17
      %p250 = scmp.lt.s32.totalorder %s17, 3
      %p251 = pnand %p249, %p250
      %p252 = pneg %p251
      // Predicated region
      $region45: #{tpu_custom_call.1} parent=5 // pred_check
        _
      $region46: #{tpu_custom_call.1} parent=5 // pred_check_branch
        %254 = sbr.rel (%p251) target = $region48
      $region47: #{tpu_custom_call.1} parent=5 // pred_region
        %s255 = ssub.s32 %s17, 1
        // Predicated region
        $region49: #{tpu_custom_call.1} parent=47 // pred_check
          %p256 = pneg %p148
        $region50: #{tpu_custom_call.1} parent=47 // pred_check_branch
          %258 = sbr.rel (%p256) target = $region52
        $region51: #{tpu_custom_call.1} parent=47 // pred_region
          %259 = dma.done [#allocation3], 1024
        $region52: #{tpu_custom_call.1} parent=47 // pred_fallthru
          _
        %p260 = scmp.lt.s32.totalorder %s22, 1
        %s261 = scalar_select %p260, %s22, 1
        %s262 = smul.addr %s261, 8
        %s263 = scalar_lea.vmem %s0, %s262
        %p264 = pneg %p43
        %p265 = pneg %p40
        %p266 = pneg %p64
        %p267 = pneg %p61
        %p268 = pneg %p85
        %p269 = pneg %p82
        %p270 = pneg %p106
        %p271 = pneg %p103
        %p272 = pneg %p127
        %p273 = pneg %p124
        %p274 = pneg %p148
        %p275 = pneg %p145
        %p276 = pneg %p169
        %p277 = pneg %p166
        %p278 = pneg %p195
        %p279 = pneg %p192
        %s280 = sand.u32 %s182, 1
        %s281 = scalar_lea.sflag [#allocation4], %s280
        %s282 = sand.u32 %s182, 1
        %s283 = smul.addr %s282, 8
        %s284 = scalar_lea.vmem [#allocation5], %s283
        %p285 = scmp.lt.s32.totalorder %s22, 1
        %s286 = scalar_select %p285, %s22, 1
        %s287 = smul.addr %s286, 8
        %s288 = scalar_lea.vmem %s0, %s287
        %v290 = vld [vmem:[%s288] sm:$0xff]
        %v291 = vld [vmem:[%s1] sm:$0x1]
        %293 = vset.pattern.permute.xlu0 0
        %294 = vperm.xlu0 %293, %v290
        %v295 = vpop.permute.xlu0 %294
        %v298 = vlaneseq
        %v299 = vshrl.u32 %v298, 7
        %v300 = vsub.s32 0, %v299
        %v301 = vrot.slane %v291, %v300
        %v303 = vmul.f32 %v295, %v301
        %v304 = vand.u32 2147483647, %v303
        %vm305 = vcmp.le.f32.partialorder %v304, 0.7853982
        %vm306 = vcmp.lt.s32.totalorder %v303, 0
        %v307 = vand.u32 %v303, 2139095040
        %v308 = vshrl.u32 %v307, 23
        %v309 = vsub.s32 %v308, 127
        %v310 = vand.u32 2147483647, %v303
        %v311 = vand.u32 %v310, 8388607
        %v312 = vor.u32 %v311, 8388608
        %v313 = vsub.s32 0, %v312
        %v314 = vadd.s32 %v309, 1
        %vm315 = vcmp.gt.s32.totalorder %v314, 0
        %v316 = vsel %vm315, %v314, 0
        %v317 = vshrl.u32 %v316, 5
        %v318 = vand.u32 %v316, 31
        %v319 = vsub.s32 32, %v318
        %v320 = vshrl.u32 683565275, %v319
        %v321 = vshll.u32 683565275, %v318
        %v322 = vshrl.u32 2475754826, %v319
        %v323 = vor.u32 %v321, %v322
        %v324 = vshll.u32 2475754826, %v318
        %v325 = vshrl.u32 2131351028, %v319
        %v326 = vor.u32 %v324, %v325
        %v327 = vshll.u32 2131351028, %v318
        %v328 = vshrl.u32 2102212464, %v319
        %v329 = vor.u32 %v327, %v328
        %v330 = vshll.u32 2102212464, %v318
        %v331 = vshrl.u32 920167782, %v319
        %v332 = vor.u32 %v330, %v331
        %v333 = vshll.u32 920167782, %v318
        %v334 = vshrl.u32 1326507024, %v319
        %v335 = vor.u32 %v333, %v334
        %vm336 = vcmp.lt.s32.totalorder %v317, 1
        %vm337 = vcmp.lt.s32.totalorder %v317, 2
        %vm338 = vcmp.lt.s32.totalorder %v317, 3
        %vm339 = vcmp.lt.s32.totalorder %v317, 4
        %v340 = vsel %vm336, %v320, %v323
        %v341 = vsel %vm339, %v329, 2102212464
        %v342 = vsel %vm338, %v326, %v341
        %v343 = vsel %vm337, %v340, %v342
        %v344 = vsel %vm336, %v323, %v326
        %v345 = vsel %vm339, %v332, 920167782
        %v346 = vsel %vm338, %v329, %v345
        %v347 = vsel %vm337, %v344, %v346
        %v348 = vsel %vm336, %v326, %v329
        %v349 = vsel %vm339, %v335, 1326507024
        %v350 = vsel %vm338, %v332, %v349
        %v351 = vsel %vm337, %v348, %v350
        %v352 = vshll.u32 %v312, 8
        %v353 = vmul.u32.u64.compose %v352, %v351
        %v354 = vextract.low.u32 %v353
        %v355 = vextract.high.u32 %v353
        %v356 = vmul.u32.u64.compose %v352, %v347
        %v357 = vextract.low.u32 %v356
        %v358 = vextract.high.u32 %v356
        %v359 = vmul.u32 %v352, %v343
        %v360 = vadd.s32 %v355, %v357
        %vm361 = vc.u32 %v355, %v357
        %v362 = vadd.s32 %v358, 1
        %v363 = vsel %vm361, %v362, %v358
        %v364 = vadd.s32 %v359, %v363
        %v365 = vadd.s32 %v364, 536870912
        %v366 = vshrl.u32 %v365, 30
        %v367 = vshll.u32 %v366, 30
        %v368 = vsub.s32 %v364, %v367
        %vm369 = vcmp.lt.s32.totalorder %v368, 0
        %v370 = vsub.s32 0, %v368
        %v371 = vsel %vm369, %v370, %v368
        %v372 = vclz %v371
        %v373 = vsub.s32 %v372, 2
        %vm374 = vcmp.gt.s32.totalorder 0, %v373
        %v375 = vsel %vm374, 0, %v373
        %v376 = vsub.s32 32, %v375
        %v377 = vshll.u32 %v368, %v375
        %v378 = vshrl.u32 %v360, %v376
        %v379 = vor.u32 %v377, %v378
        %v380 = vsub.s32 4294967266, %v375
        %v381 = vadd.s32 %v380, 127
        %v382 = vshll.u32 %v381, 23
        %v383 = vor.u32 4788187, %v382
        %v384 = vand.u32 2147483647, %v383
        %v386 = vcvt.s32.f32 %v379
        %v387 = vmul.f32 %v386, %v384
        %v388 = vxor.u32 %v387, 2147483648
        %v389 = vsel %vm306, %v388, %v387
        %v390 = vsub.s32 4, %v366
        %v391 = vsel %vm306, %v390, %v366
        %v392 = vsel %vm305, %v303, %v389
        %v393 = vsel %vm305, 0, %v391
        %v394 = vcosq.f32.pop %v392
        %v395 = vsinq.f32.pop %v392
        %vm396 = vweird.f32 %v303
        %v397 = vadd.s32 %v393, 3
        %v398 = vand.u32 %v397, 3
        %vm399 = vcmp.lt.s32.totalorder %v398, 2
        %vm400 = vcmp.eq.s32.totalorder %v398, 0
        %v401 = vxor.u32 %v395, 2147483648
        %v402 = vsel %vm400, %v394, %v401
        %vm403 = vcmp.eq.s32.totalorder %v398, 2
        %v404 = vxor.u32 %v394, 2147483648
        %v405 = vsel %vm403, %v404, %v395
        %v406 = vsel %vm399, %v402, %v405
        %v407 = vsel %vm396, nan, %v406
        %v408 = vpack.c.bf16 %v407, %v407
        %v409 = vand.u32 2147483647, %v303
        %vm410 = vcmp.le.f32.partialorder %v409, 0.7853982
        %vm411 = vcmp.lt.s32.totalorder %v303, 0
        %v412 = vand.u32 %v303, 2139095040
        %v413 = vshrl.u32 %v412, 23
        %v414 = vsub.s32 %v413, 127
        %v415 = vand.u32 2147483647, %v303
        %v416 = vand.u32 %v415, 8388607
        %v417 = vor.u32 %v416, 8388608
        %v418 = vsub.s32 0, %v417
        %v419 = vadd.s32 %v414, 1
        %vm420 = vcmp.gt.s32.totalorder %v419, 0
        %v421 = vsel %vm420, %v419, 0
        %v422 = vshrl.u32 %v421, 5
        %v423 = vand.u32 %v421, 31
        %v424 = vsub.s32 32, %v423
        %v425 = vshrl.u32 683565275, %v424
        %v426 = vshll.u32 683565275, %v423
        %v427 = vshrl.u32 2475754826, %v424
        %v428 = vor.u32 %v426, %v427
        %v429 = vshll.u32 2475754826, %v423
        %v430 = vshrl.u32 2131351028, %v424
        %v431 = vor.u32 %v429, %v430
        %v432 = vshll.u32 2131351028, %v423
        %v433 = vshrl.u32 2102212464, %v424
        %v434 = vor.u32 %v432, %v433
        %v435 = vshll.u32 2102212464, %v423
        %v436 = vshrl.u32 920167782, %v424
        %v437 = vor.u32 %v435, %v436
        %v438 = vshll.u32 920167782, %v423
        %v439 = vshrl.u32 1326507024, %v424
        %v440 = vor.u32 %v438, %v439
        %vm441 = vcmp.lt.s32.totalorder %v422, 1
        %vm442 = vcmp.lt.s32.totalorder %v422, 2
        %vm443 = vcmp.lt.s32.totalorder %v422, 3
        %vm444 = vcmp.lt.s32.totalorder %v422, 4
        %v445 = vsel %vm441, %v425, %v428
        %v446 = vsel %vm444, %v434, 2102212464
        %v447 = vsel %vm443, %v431, %v446
        %v448 = vsel %vm442, %v445, %v447
        %v449 = vsel %vm441, %v428, %v431
        %v450 = vsel %vm444, %v437, 920167782
        %v451 = vsel %vm443, %v434, %v450
        %v452 = vsel %vm442, %v449, %v451
        %v453 = vsel %vm441, %v431, %v434
        %v454 = vsel %vm444, %v440, 1326507024
        %v455 = vsel %vm443, %v437, %v454
        %v456 = vsel %vm442, %v453, %v455
        %v457 = vshll.u32 %v417, 8
        %v458 = vmul.u32.u64.compose %v457, %v456
        %v459 = vextract.low.u32 %v458
        %v460 = vextract.high.u32 %v458
        %v461 = vmul.u32.u64.compose %v457, %v452
        %v462 = vextract.low.u32 %v461
        %v463 = vextract.high.u32 %v461
        %v464 = vmul.u32 %v457, %v448
        %v465 = vadd.s32 %v460, %v462
        %vm466 = vc.u32 %v460, %v462
        %v467 = vadd.s32 %v463, 1
        %v468 = vsel %vm466, %v467, %v463
        %v469 = vadd.s32 %v464, %v468
        %v470 = vadd.s32 %v469, 536870912
        %v471 = vshrl.u32 %v470, 30
        %v472 = vshll.u32 %v471, 30
        %v473 = vsub.s32 %v469, %v472
        %vm474 = vcmp.lt.s32.totalorder %v473, 0
        %v475 = vsub.s32 0, %v473
        %v476 = vsel %vm474, %v475, %v473
        %v477 = vclz %v476
        %v478 = vsub.s32 %v477, 2
        %vm479 = vcmp.gt.s32.totalorder 0, %v478
        %v480 = vsel %vm479, 0, %v478
        %v481 = vsub.s32 32, %v480
        %v482 = vshll.u32 %v473, %v480
        %v483 = vshrl.u32 %v465, %v481
        %v484 = vor.u32 %v482, %v483
        %v485 = vsub.s32 4294967266, %v480
        %v486 = vadd.s32 %v485, 127
        %v487 = vshll.u32 %v486, 23
        %v488 = vor.u32 4788187, %v487
        %v489 = vand.u32 2147483647, %v488
        %v491 = vcvt.s32.f32 %v484
        %v492 = vmul.f32 %v491, %v489
        %v493 = vxor.u32 %v492, 2147483648
        %v494 = vsel %vm411, %v493, %v492
        %v495 = vsub.s32 4, %v471
        %v496 = vsel %vm411, %v495, %v471
        %v497 = vsel %vm410, %v303, %v494
        %v498 = vsel %vm410, 0, %v496
        %v499 = vcosq.f32.pop %v497
        %v500 = vsinq.f32.pop %v497
        %vm501 = vweird.f32 %v303
        %v502 = vand.u32 %v498, 3
        %vm503 = vcmp.lt.s32.totalorder %v502, 2
        %vm504 = vcmp.eq.s32.totalorder %v502, 0
        %v505 = vxor.u32 %v500, 2147483648
        %v506 = vsel %vm504, %v499, %v505
        %vm507 = vcmp.eq.s32.totalorder %v502, 2
        %v508 = vxor.u32 %v499, 2147483648
        %v509 = vsel %vm507, %v508, %v500
        %v510 = vsel %vm503, %v506, %v509
        %v511 = vsel %vm501, nan, %v510
        %v512 = vpack.c.bf16 %v511, %v511
        %v513 = vld [vmem:[%s2] sm:$0xf]
        %v514 = vld [vmem:[%s2 + $0x4] sm:$0xf]
        %v515 = vld [vmem:[%s3] sm:$0xf]
        %v516 = vld [vmem:[%s3 + $0x4] sm:$0xf]
        %v519 = vunpack.c.l.b16 %v515
        %v520 = vunpack.c.l.b16 %v516
        %v521 = vpack.c.b16 %v520, %v519
        %vm523 = vcmask 130048
        %v525 = vsel %vm523, %v512, 0
        %527 = vmatprep.subr.bf16.mxu0 0
        %528 = vmatpush1.bf16.msra.mxu0 %v521
        %529 = vmatprep.subr.bf16.mxu0 0
        %530 = vmatpush1.bf16.msra.mxu0 0
        %531 = vmatprep.subr.bf16.mxu0 0
        %532 = vmatpush1.bf16.msra.mxu0 0
        %533 = vmatprep.subr.bf16.mxu0 0
        %534 = vmatpush1.bf16.msra.mxu0 0
        %535 = vmatprep.subr.bf16.mxu0 0
        %536 = vmatpush1.bf16.msra.mxu0 0
        %537 = vmatprep.subr.bf16.mxu0 0
        %538 = vmatpush1.bf16.msra.mxu0 0
        %539 = vmatprep.subr.bf16.mxu0 0
        %540 = vmatpush1.bf16.msra.mxu0 0
        %541 = vmatprep.subr.bf16.mxu0 0
        %542 = vmatpush1.bf16.msra.mxu0 0
        %543 = vmatprep.subr.bf16.mxu0 0
        %544 = vmatpush1.bf16.msra.mxu0 0
        %545 = vmatprep.subr.bf16.mxu0 0
        %546 = vmatpush1.bf16.msra.mxu0 0
        %547 = vmatprep.subr.bf16.mxu0 0
        %548 = vmatpush1.bf16.msra.mxu0 0
        %549 = vmatprep.subr.bf16.mxu0 0
        %550 = vmatpush1.bf16.msra.mxu0 0
        %551 = vmatprep.subr.bf16.mxu0 0
        %552 = vmatpush1.bf16.msra.mxu0 0
        %553 = vmatprep.subr.bf16.mxu0 0
        %554 = vmatpush1.bf16.msra.mxu0 0
        %555 = vmatprep.subr.bf16.mxu0 0
        %556 = vmatpush1.bf16.msra.mxu0 0
        %557 = vmatprep.subr.bf16.mxu0 0
        %558 = vmatpush1.bf16.msra.mxu0 0
        %559 = vmatprep.mubr.bf16.mxu0 0
        %560 = vmatmul.mubr.bf16.gmra.mrb[0].mxu0 %v525
        %v561 = vpop.f32.mrb[0].mxu0
        %v562 = vadd.f32 0.0, %v561
        %v563 = vpop.f32.mrb[0].mxu0
        %v564 = vpop.f32.mrb[0].mxu0
        %v565 = vpop.f32.mrb[0].mxu0
        %566 = vdwg.mxu0
        %v569 = vunpack.c.l.b16 %v513
        %v570 = vunpack.c.l.b16 %v514
        %v571 = vpack.c.b16 %v570, %v569
        %v574 = vsel %vm523, %v408, 0
        %576 = vmatprep.subr.bf16.mxu0 0
        %577 = vmatpush1.bf16.msra.mxu0 %v571
        %578 = vmatprep.subr.bf16.mxu0 0
        %579 = vmatpush1.bf16.msra.mxu0 0
        %580 = vmatprep.subr.bf16.mxu0 0
        %581 = vmatpush1.bf16.msra.mxu0 0
        %582 = vmatprep.subr.bf16.mxu0 0
        %583 = vmatpush1.bf16.msra.mxu0 0
        %584 = vmatprep.subr.bf16.mxu0 0
        %585 = vmatpush1.bf16.msra.mxu0 0
        %586 = vmatprep.subr.bf16.mxu0 0
        %587 = vmatpush1.bf16.msra.mxu0 0
        %588 = vmatprep.subr.bf16.mxu0 0
        %589 = vmatpush1.bf16.msra.mxu0 0
        %590 = vmatprep.subr.bf16.mxu0 0
        %591 = vmatpush1.bf16.msra.mxu0 0
        %592 = vmatprep.subr.bf16.mxu0 0
        %593 = vmatpush1.bf16.msra.mxu0 0
        %594 = vmatprep.subr.bf16.mxu0 0
        %595 = vmatpush1.bf16.msra.mxu0 0
        %596 = vmatprep.subr.bf16.mxu0 0
        %597 = vmatpush1.bf16.msra.mxu0 0
        %598 = vmatprep.subr.bf16.mxu0 0
        %599 = vmatpush1.bf16.msra.mxu0 0
        %600 = vmatprep.subr.bf16.mxu0 0
        %601 = vmatpush1.bf16.msra.mxu0 0
        %602 = vmatprep.subr.bf16.mxu0 0
        %603 = vmatpush1.bf16.msra.mxu0 0
        %604 = vmatprep.subr.bf16.mxu0 0
        %605 = vmatpush1.bf16.msra.mxu0 0
        %606 = vmatprep.subr.bf16.mxu0 0
        %607 = vmatpush1.bf16.msra.mxu0 0
        %608 = vmatprep.mubr.bf16.mxu0 0
        %609 = vmatmul.mubr.bf16.gmra.mrb[0].mxu0 %v574
        %v610 = vpop.f32.mrb[0].mxu0
        %v611 = vadd.f32 %v562, %v610
        %v612 = vpop.f32.mrb[0].mxu0
        %v613 = vpop.f32.mrb[0].mxu0
        %v614 = vpop.f32.mrb[0].mxu0
        %615 = vdwg.mxu0
        %v616 = vld [vmem:[%s4] sm:$0x1]
        %v618 = vlaneseq
        %v619 = vshrl.u32 %v618, 7
        %v620 = vsub.s32 0, %v619
        %v621 = vrot.slane %v616, %v620
        %v623 = vadd.f32 %v611, %v621
        %v624 = vmul.f32 %v623, 0.5
        %v625 = vmul.f32 %v623, 0.70710677
        %v626 = verf.f32.pop %v625
        %v627 = vadd.f32 %v626, 1.0
        %v628 = vmul.f32 %v624, %v627
        %v629 = vpack.c.bf16 %v628, %v628
        %v630 = vld [vmem:[#allocation2] sm:$0xf]
        %v631 = vld [vmem:[#allocation2 + $0x4] sm:$0xf]
        %v632 = vld [vmem:[#allocation2 + $0x8] sm:$0xf]
        %v633 = vld [vmem:[#allocation2 + $0xc] sm:$0xf]
        %v634 = vld [vmem:[#allocation2 + $0x10] sm:$0xf]
        %v635 = vld [vmem:[#allocation2 + $0x14] sm:$0xf]
        %v636 = vld [vmem:[#allocation2 + $0x18] sm:$0xf]
        %v637 = vld [vmem:[#allocation2 + $0x1c] sm:$0xf]
        %v638 = vld [vmem:[#allocation2 + $0x20] sm:$0xf]
        %v639 = vld [vmem:[#allocation2 + $0x24] sm:$0xf]
        %v640 = vld [vmem:[#allocation2 + $0x28] sm:$0xf]
        %v641 = vld [vmem:[#allocation2 + $0x2c] sm:$0xf]
        %v642 = vld [vmem:[#allocation2 + $0x30] sm:$0xf]
        %v643 = vld [vmem:[#allocation2 + $0x34] sm:$0xf]
        %v644 = vld [vmem:[#allocation2 + $0x38] sm:$0xf]
        %v645 = vld [vmem:[#allocation2 + $0x3c] sm:$0xf]
        %v646 = vld [vmem:[%s6] sm:$0x1]
        %v648 = vlaneseq
        %v649 = vshrl.u32 %v648, 7
        %v650 = vsub.s32 0, %v649
        %v651 = vrot.slane %v646, %v650
        %v669 = vunpack.c.l.b16 %v630
        %v670 = vunpack.c.l.b16 %v631
        %v671 = vunpack.c.l.b16 %v632
        %v672 = vunpack.c.l.b16 %v633
        %v673 = vunpack.c.l.b16 %v634
        %v674 = vunpack.c.l.b16 %v635
        %v675 = vunpack.c.l.b16 %v636
        %v676 = vunpack.c.l.b16 %v637
        %v677 = vunpack.c.l.b16 %v638
        %v678 = vunpack.c.l.b16 %v639
        %v679 = vunpack.c.l.b16 %v640
        %v680 = vunpack.c.l.b16 %v641
        %v681 = vunpack.c.l.b16 %v642
        %v682 = vunpack.c.l.b16 %v643
        %v683 = vunpack.c.l.b16 %v644
        %v684 = vunpack.c.l.b16 %v645
        %v685 = vpack.c.b16 %v670, %v669
        %v686 = vpack.c.b16 %v672, %v671
        %v687 = vpack.c.b16 %v674, %v673
        %v688 = vpack.c.b16 %v676, %v675
        %v689 = vpack.c.b16 %v678, %v677
        %v690 = vpack.c.b16 %v680, %v679
        %v691 = vpack.c.b16 %v682, %v681
        %v692 = vpack.c.b16 %v684, %v683
        %701 = vmatprep.subr.bf16.mxu0 0
        %702 = vmatpush1.bf16.msra.mxu0 %v685
        %703 = vmatprep.subr.bf16.mxu0 0
        %704 = vmatpush1.bf16.msra.mxu0 %v686
        %705 = vmatprep.subr.bf16.mxu0 0
        %706 = vmatpush1.bf16.msra.mxu0 %v687
        %707 = vmatprep.subr.bf16.mxu0 0
        %708 = vmatpush1.bf16.msra.mxu0 %v688
        %709 = vmatprep.subr.bf16.mxu0 0
        %710 = vmatpush1.bf16.msra.mxu0 %v689
        %711 = vmatprep.subr.bf16.mxu0 0
        %712 = vmatpush1.bf16.msra.mxu0 %v690
        %713 = vmatprep.subr.bf16.mxu0 0
        %714 = vmatpush1.bf16.msra.mxu0 %v691
        %715 = vmatprep.subr.bf16.mxu0 0
        %716 = vmatpush1.bf16.msra.mxu0 %v692
        %717 = vmatprep.subr.bf16.mxu0 0
        %718 = vmatpush1.bf16.msra.mxu0 0
        %719 = vmatprep.subr.bf16.mxu0 0
        %720 = vmatpush1.bf16.msra.mxu0 0
        %721 = vmatprep.subr.bf16.mxu0 0
        %722 = vmatpush1.bf16.msra.mxu0 0
        %723 = vmatprep.subr.bf16.mxu0 0
        %724 = vmatpush1.bf16.msra.mxu0 0
        %725 = vmatprep.subr.bf16.mxu0 0
        %726 = vmatpush1.bf16.msra.mxu0 0
        %727 = vmatprep.subr.bf16.mxu0 0
        %728 = vmatpush1.bf16.msra.mxu0 0
        %729 = vmatprep.subr.bf16.mxu0 0
        %730 = vmatpush1.bf16.msra.mxu0 0
        %731 = vmatprep.subr.bf16.mxu0 0
        %732 = vmatpush1.bf16.msra.mxu0 0
        %733 = vmatprep.mubr.bf16.mxu0 0
        %734 = vmatmul.mubr.bf16.gmra.mrb[0].mxu0 %v629
        %v735 = vpop.f32.mrb[0].mxu0
        %v736 = vadd.f32 %v651, %v735
        %v737 = vpop.f32.mrb[0].mxu0
        %v738 = vpop.f32.mrb[0].mxu0
        %v739 = vpop.f32.mrb[0].mxu0
        %740 = vdwg.mxu0
        %741 = vst [vmem:[%s284] sm:$0xff] %v736
        %s742 = sand.u32 %s182, 1
        %s743 = scalar_lea.sflag [#allocation4], %s742
        %s744 = sand.u32 %s182, 1
        %s745 = smul.addr %s744, 8
        %s746 = scalar_lea.vmem [#allocation5], %s745
        // Predicated region
        $region53: #{tpu_custom_call.1} parent=47 // pred_check
          %p747 = pneg %p192
        $region54: #{tpu_custom_call.1} parent=47 // pred_check_branch
          %749 = sbr.rel (%p747) target = $region56
        $region55: #{tpu_custom_call.1} parent=47 // pred_region
          %s751 = ssub.s32 128, 128
          %752 = vsyncadd %s743, %s751
          %s753 = smul.addr %s22, 128
          %s754 = scalar_lea.hbm %s7, %s753
          %s756 = sshll.u32 %s746, 4
          %s757 = int_to_ptr.vmem [resolvable:$true] %s756
          %759 = dma.vmem_to_hbm [thread:$0]  %s757, 128, %s754, %s743
        $region56: #{tpu_custom_call.1} parent=47 // pred_fallthru
          _
      $region48: #{tpu_custom_call.1} parent=5 // pred_fallthru
        _
      %p760 = scmp.le.s32.totalorder 2, %s17
      // Predicated region
      $region57: #{tpu_custom_call.1} parent=5 // pred_check
        %p761 = pneg %p760
      $region58: #{tpu_custom_call.1} parent=5 // pred_check_branch
        %763 = sbr.rel (%p761) target = $region60
      $region59: #{tpu_custom_call.1} parent=5 // pred_region
        %s764 = ssub.s32 %s17, 2
        // Predicated region
        $region61: #{tpu_custom_call.1} parent=59 // pred_check
          %p765 = pneg %p198
        $region62: #{tpu_custom_call.1} parent=59 // pred_check_branch
          %767 = sbr.rel (%p765) target = $region64
        $region63: #{tpu_custom_call.1} parent=59 // pred_region
          %s768 = sand.u32 %s183, 1
          %s769 = scalar_lea.sflag [#allocation4], %s768
          %s770 = sand.u32 %s183, 1
          %s771 = smul.addr %s770, 8
          %s772 = scalar_lea.vmem [#allocation5], %s771
          %773 = dma.done %s769, 128
        $region64: #{tpu_custom_call.1} parent=59 // pred_fallthru
          _
      $region60: #{tpu_custom_call.1} parent=5 // pred_fallthru
        _
    $region6: #{tpu_custom_call.1} parent=1 // loop_footer
      %s21 = sadd.s32 1, %s17
    $region7: #{tpu_custom_call.1} parent=1 // loop_footer_branch
      %16 = sbr.rel target = $region3
    $region8: #{tpu_custom_call.1} parent=1 // loop_exit
      _
    %774 = vsyncpa [#allocation3], 1
    %s775 = scalar_lea.sflag [#allocation3], 1
    %776 = vsyncpa %s775, 1
    %777 = vsyncpa [#allocation4], 1
    %s778 = scalar_lea.sflag [#allocation4], 1
    %779 = vsyncpa %s778, 1

</llo_original>
